<compile_context>
chip_gen: v6e
topology: v6e:2x2x1
jax: 0.10.0
libtpu: 0.0.40
codegen_flags: <defaults>
</compile_context>

<pallas_src>
import jax
import jax.numpy as jnp
from jax.experimental import pallas as pl
from jax.experimental.pallas import tpu as pltpu

# ---- module hyperparameters (as hardcoded in actor_teacher_backbone) --------
NUM_PROP = 48
NUM_HIST = 10
LATENT_DIM = 16
LAT7 = LATENT_DIM + 7                    # 23 (latents + 7 priv dims)
NUM_ACTIONS = 12
MLP_ENCODER_DIMS = (512, 256, 128)
ACTOR_DIMS = (512, 256, 128)
BATCH = 2
LN_EPS = 1e-5


# ---------------------------------------------------------------------------
# Pallas kernel: entire actor forward in one program.
# ---------------------------------------------------------------------------
def actor_kernel(obs_ref, hist_ref,
                 w1h_ref, w1o_ref, w2_ref, w3_ref, w4_ref,
                 a1l_ref, a1o_ref, a2_ref, a3_ref, a4_ref,
                 vec_ref, out_ref):
    f32 = jnp.float32
    D1, D2, D3 = MLP_ENCODER_DIMS
    A1, A2, A3 = ACTOR_DIMS

    def elu(x):
        # clamped exp avoids inf on the never-selected branch
        return jnp.where(x > 0, x, jnp.exp(jnp.minimum(x, 0.0)) - 1.0)

    def layernorm(x, g, b):
        mu = jnp.mean(x, axis=-1, keepdims=True)
        xc = x - mu
        var = jnp.mean(xc * xc, axis=-1, keepdims=True)
        return xc * jax.lax.rsqrt(var + LN_EPS) * g + b

    obs = obs_ref[...]                    # [B, P]
    hist = hist_ref[...]                  # [B, num_hist*P] (raw history, flattened)
    vecs = vec_ref[...]                   # [16, 512] packed biases / LN params, loaded once

    # --- mlp_encoder: (Linear -> LayerNorm -> ELU) x3 -> Linear ------------
    # history roll folded into w1h (shifted + zeroed rows) and w1o (current obs rows)
    x = (jnp.dot(hist, w1h_ref[...], preferred_element_type=f32)
         + jnp.dot(obs, w1o_ref[...], preferred_element_type=f32)
         + vecs[0:1, :D1])
    x = elu(layernorm(x, vecs[1:2, :D1], vecs[2:3, :D1]))

    x = jnp.dot(x, w2_ref[...], preferred_element_type=f32) + vecs[3:4, :D2]
    x = elu(layernorm(x, vecs[4:5, :D2], vecs[5:6, :D2]))

    x = jnp.dot(x, w3_ref[...], preferred_element_type=f32) + vecs[6:7, :D3]
    x = elu(layernorm(x, vecs[7:8, :D3], vecs[8:9, :D3]))

    lat = jnp.dot(x, w4_ref[...], preferred_element_type=f32) + vecs[9:10, :LAT7]

    # --- actor MLP on cat([latents, obs]); concat avoided via split weight --
    y = elu(jnp.dot(lat, a1l_ref[...], preferred_element_type=f32)
            + jnp.dot(obs, a1o_ref[...], preferred_element_type=f32)
            + vecs[10:11, :A1])
    y = elu(jnp.dot(y, a2_ref[...], preferred_element_type=f32) + vecs[11:12, :A2])
    y = elu(jnp.dot(y, a3_ref[...], preferred_element_type=f32) + vecs[12:13, :A3])
    y = jnp.dot(y, a4_ref[...], preferred_element_type=f32) + vecs[13:14, :NUM_ACTIONS]

    out_ref[...] = y.astype(out_ref.dtype)


def actor_forward(obs, obs_hist, kparams):
    """obs: [B, P] f32, obs_hist: [B, num_hist, P] f32  ->  mean: [B, num_actions] f32."""
    B = obs.shape[0]
    hist_flat = obs_hist.reshape(B, NUM_HIST * NUM_PROP)   # contiguous reshape, no copy glue
    args = (obs, hist_flat) + kparams
    vmem = pl.BlockSpec(memory_space=pltpu.MemorySpace.VMEM)
    return pl.pallas_call(
        actor_kernel,
        out_shape=jax.ShapeDtypeStruct((B, NUM_ACTIONS), jnp.float32),
        in_specs=[vmem] * len(args),
        out_specs=vmem,
    )(*args)


# ---------------------------------------------------------------------------
# Deterministic parameter construction (weights stored [in_features, out_features]).
# ---------------------------------------------------------------------------
def make_params(key):
    def lin(k, fan_in, fan_out):
        kw, kb = jax.random.split(k)
        s = 1.0 / jnp.sqrt(jnp.float32(fan_in))
        w = jax.random.uniform(kw, (fan_in, fan_out), jnp.float32, -s, s)
        b = jax.random.uniform(kb, (fan_out,), jnp.float32, -s, s)
        return w, b

    def ln(k, dim):
        kg, kb = jax.random.split(k)
        g = 1.0 + 0.1 * jax.random.normal(kg, (dim,), jnp.float32)
        b = 0.1 * jax.random.normal(kb, (dim,), jnp.float32)
        return g, b

    keys = jax.random.split(key, 16)
    P, H = NUM_PROP, NUM_HIST
    D1, D2, D3 = MLP_ENCODER_DIMS
    A1, A2, A3 = ACTOR_DIMS

    p = {}
    p['e_w1'], p['e_b1'] = lin(keys[0], P * H, D1)
    p['ln1_g'], p['ln1_b'] = ln(keys[1], D1)
    p['e_w2'], p['e_b2'] = lin(keys[2], D1, D2)
    p['ln2_g'], p['ln2_b'] = ln(keys[3], D2)
    p['e_w3'], p['e_b3'] = lin(keys[4], D2, D3)
    p['ln3_g'], p['ln3_b'] = ln(keys[5], D3)
    p['e_w4'], p['e_b4'] = lin(keys[6], D3, LAT7)
    p['a_w1'], p['a_b1'] = lin(keys[7], LAT7 + P, A1)
    p['a_w2'], p['a_b2'] = lin(keys[8], A1, A2)
    p['a_w3'], p['a_b3'] = lin(keys[9], A2, A3)
    p['a_w4'], p['a_b4'] = lin(keys[10], A3, NUM_ACTIONS)
    return p


def pack_params(p):
    """Fold the history roll / concats into the weights and pack all small vectors."""
    P, H = NUM_PROP, NUM_HIST
    w1 = p['e_w1']                                         # [P*H, 512]
    # hist_full = [hist[1:], obs]  ==>  shift weight rows by P, zero the dropped rows
    w1h = jnp.zeros_like(w1).at[P:, :].set(w1[:(H - 1) * P, :])
    w1o = w1[(H - 1) * P:, :]                              # rows that multiply current obs
    a1 = p['a_w1']                                         # [LAT7 + P, 512]
    a1l = a1[:LAT7, :]                                     # rows that multiply latents
    a1o = a1[LAT7:, :]                                     # rows that multiply obs

    # one [16, 512] slab for every bias / LayerNorm vector -> single DMA
    vecs = jnp.zeros((16, 512), jnp.float32)
    rows = [p['e_b1'], p['ln1_g'], p['ln1_b'],
            p['e_b2'], p['ln2_g'], p['ln2_b'],
            p['e_b3'], p['ln3_g'], p['ln3_b'],
            p['e_b4'],
            p['a_b1'], p['a_b2'], p['a_b3'], p['a_b4']]
    for i, v in enumerate(rows):
        vecs = vecs.at[i, :v.shape[0]].set(v)

    return (w1h, w1o, p['e_w2'], p['e_w3'], p['e_w4'],
            a1l, a1o, p['a_w2'], p['a_w3'], p['a_w4'], vecs)


# ---------------------------------------------------------------------------
# Pure-JAX reference (literal translation of MlpBarlowTwinsActor.forward).
# ---------------------------------------------------------------------------
def _layernorm_ref(x, g, b):
    mu = jnp.mean(x, axis=-1, keepdims=True)
    var = jnp.mean((x - mu) ** 2, axis=-1, keepdims=True)
    return (x - mu) / jnp.sqrt(var + LN_EPS) * g + b


def reference_forward(obs, obs_hist, p):
    hist_full = jnp.concatenate([obs_hist[:, 1:, :], obs[:, None, :]], axis=1)
    b = hist_full.shape[0]
    x = hist_full.reshape(b, -1)
    x = jax.nn.elu(_layernorm_ref(x @ p['e_w1'] + p['e_b1'], p['ln1_g'], p['ln1_b']))
    x = jax.nn.elu(_layernorm_ref(x @ p['e_w2'] + p['e_b2'], p['ln2_g'], p['ln2_b']))
    x = jax.nn.elu(_layernorm_ref(x @ p['e_w3'] + p['e_b3'], p['ln3_g'], p['ln3_b']))
    lat = x @ p['e_w4'] + p['e_b4']
    ai = jnp.concatenate([lat, obs], axis=-1)
    y = jax.nn.elu(ai @ p['a_w1'] + p['a_b1'])
    y = jax.nn.elu(y @ p['a_w2'] + p['a_b2'])
    y = jax.nn.elu(y @ p['a_w3'] + p['a_b3'])
    return y @ p['a_w4'] + p['a_b4']


if __name__ == "__main__":
    key = jax.random.PRNGKey(0)
    k_obs, k_hist, k_par = jax.random.split(key, 3)
    obs = jax.random.normal(k_obs, (BATCH, NUM_PROP), jnp.float32)
    obs_hist = jax.random.normal(k_hist, (BATCH, NUM_HIST, NUM_PROP), jnp.float32)

    raw_params = make_params(k_par)
    kparams = pack_params(raw_params)

    mean = actor_forward(obs, obs_hist, kparams)
    mean = jax.block_until_ready(mean)

    ref = reference_forward(obs, obs_hist, raw_params)
    assert mean.shape == (BATCH, NUM_ACTIONS)
    assert jnp.allclose(mean, ref, atol=1e-4, rtol=1e-4), "kernel/reference mismatch"
    print("KERNEL_OK")
</pallas_src>

<mosaic_0001>
module attributes {stable_mosaic.version = 11 : i64} {
  func.func @actor_kernel(%arg0: memref<2x48xf32, #tpu.memory_space<vmem>>, %arg1: memref<2x480xf32, #tpu.memory_space<vmem>>, %arg2: memref<480x512xf32, #tpu.memory_space<vmem>>, %arg3: memref<48x512xf32, #tpu.memory_space<vmem>>, %arg4: memref<512x256xf32, #tpu.memory_space<vmem>>, %arg5: memref<256x128xf32, #tpu.memory_space<vmem>>, %arg6: memref<128x23xf32, #tpu.memory_space<vmem>>, %arg7: memref<23x512xf32, #tpu.memory_space<vmem>>, %arg8: memref<48x512xf32, #tpu.memory_space<vmem>>, %arg9: memref<512x256xf32, #tpu.memory_space<vmem>>, %arg10: memref<256x128xf32, #tpu.memory_space<vmem>>, %arg11: memref<128x12xf32, #tpu.memory_space<vmem>>, %arg12: memref<16x512xf32, #tpu.memory_space<vmem>>, %arg13: memref<2x12xf32, #tpu.memory_space<vmem>>) attributes {dimension_semantics = [], scalar_prefetch = 0 : i64, scratch_operands = 0 : i64, tpu.core_type = #tpu.core_type<tc>} {
    %c0 = arith.constant 0 : index
    %c0_0 = arith.constant 0 : index
    %0 = vector.load %arg0[%c0, %c0_0] : memref<2x48xf32, #tpu.memory_space<vmem>>, vector<2x48xf32>
    %c0_1 = arith.constant 0 : index
    %c0_2 = arith.constant 0 : index
    %1 = vector.load %arg1[%c0_1, %c0_2] : memref<2x480xf32, #tpu.memory_space<vmem>>, vector<2x480xf32>
    %c0_3 = arith.constant 0 : index
    %c0_4 = arith.constant 0 : index
    %2 = vector.load %arg12[%c0_3, %c0_4] : memref<16x512xf32, #tpu.memory_space<vmem>>, vector<16x512xf32>
    %c0_5 = arith.constant 0 : index
    %c0_6 = arith.constant 0 : index
    %3 = vector.load %arg2[%c0_5, %c0_6] : memref<480x512xf32, #tpu.memory_space<vmem>>, vector<480x512xf32>
    %cst = arith.constant dense<0.000000e+00> : vector<2x512xf32>
    %4 = tpu.matmul %1, %3, %cst {dimension_numbers = #tpu.dot_dimension_numbers<[1], [0], [0], [1], [0, 0, 1, 1], [], []>} : vector<2x480xf32>, vector<480x512xf32>, vector<2x512xf32> -> vector<2x512xf32>
    %c0_7 = arith.constant 0 : index
    %c0_8 = arith.constant 0 : index
    %5 = vector.load %arg3[%c0_7, %c0_8] : memref<48x512xf32, #tpu.memory_space<vmem>>, vector<48x512xf32>
    %cst_9 = arith.constant dense<0.000000e+00> : vector<2x512xf32>
    %6 = tpu.matmul %0, %5, %cst_9 {dimension_numbers = #tpu.dot_dimension_numbers<[1], [0], [0], [1], [0, 0, 1, 1], [], []>} : vector<2x48xf32>, vector<48x512xf32>, vector<2x512xf32> -> vector<2x512xf32>
    %7 = arith.addf %4, %6 : vector<2x512xf32>
    %8 = vector.extract_strided_slice %2 {offsets = [0, 0], sizes = [1, 512], strides = [1, 1]} : vector<16x512xf32> to vector<1x512xf32>
    %9 = vector.broadcast %8 : vector<1x512xf32> to vector<2x512xf32>
    %10 = arith.addf %7, %9 : vector<2x512xf32>
    %11 = vector.extract_strided_slice %2 {offsets = [1, 0], sizes = [1, 512], strides = [1, 1]} : vector<16x512xf32> to vector<1x512xf32>
    %12 = vector.extract_strided_slice %2 {offsets = [2, 0], sizes = [1, 512], strides = [1, 1]} : vector<16x512xf32> to vector<1x512xf32>
    %cst_10 = arith.constant dense<0.000000e+00> : vector<2xf32>
    %13 = vector.multi_reduction <add>, %10, %cst_10 [1] : vector<2x512xf32> to vector<2xf32>
    %14 = vector.shape_cast %13 : vector<2xf32> to vector<2x1xf32>
    %cst_11 = arith.constant 5.120000e+02 : f32
    %15 = vector.broadcast %cst_11 : f32 to vector<2x1xf32>
    %16 = arith.divf %14, %15 : vector<2x1xf32>
    %17 = vector.broadcast %16 : vector<2x1xf32> to vector<2x512xf32>
    %18 = arith.subf %10, %17 : vector<2x512xf32>
    %19 = arith.mulf %18, %18 : vector<2x512xf32>
    %cst_12 = arith.constant dense<0.000000e+00> : vector<2xf32>
    %20 = vector.multi_reduction <add>, %19, %cst_12 [1] : vector<2x512xf32> to vector<2xf32>
    %21 = vector.shape_cast %20 : vector<2xf32> to vector<2x1xf32>
    %cst_13 = arith.constant 5.120000e+02 : f32
    %22 = vector.broadcast %cst_13 : f32 to vector<2x1xf32>
    %23 = arith.divf %21, %22 : vector<2x1xf32>
    %cst_14 = arith.constant 9.99999974E-6 : f32
    %24 = vector.broadcast %cst_14 : f32 to vector<2x1xf32>
    %25 = arith.addf %23, %24 : vector<2x1xf32>
    %26 = math.rsqrt %25 : vector<2x1xf32>
    %27 = vector.broadcast %26 : vector<2x1xf32> to vector<2x512xf32>
    %28 = arith.mulf %18, %27 : vector<2x512xf32>
    %29 = vector.broadcast %11 : vector<1x512xf32> to vector<2x512xf32>
    %30 = arith.mulf %28, %29 : vector<2x512xf32>
    %31 = vector.broadcast %12 : vector<1x512xf32> to vector<2x512xf32>
    %32 = arith.addf %30, %31 : vector<2x512xf32>
    %cst_15 = arith.constant 0.000000e+00 : f32
    %33 = vector.broadcast %cst_15 : f32 to vector<2x512xf32>
    %34 = arith.cmpf ogt, %32, %33 : vector<2x512xf32>
    %cst_16 = arith.constant 0.000000e+00 : f32
    %35 = vector.broadcast %cst_16 : f32 to vector<2x512xf32>
    %36 = arith.minimumf %32, %35 : vector<2x512xf32>
    %37 = math.exp %36 : vector<2x512xf32>
    %cst_17 = arith.constant 1.000000e+00 : f32
    %38 = vector.broadcast %cst_17 : f32 to vector<2x512xf32>
    %39 = arith.subf %37, %38 : vector<2x512xf32>
    %40 = arith.select %34, %32, %39 : vector<2x512xi1>, vector<2x512xf32>
    %c0_18 = arith.constant 0 : index
    %c0_19 = arith.constant 0 : index
    %41 = vector.load %arg4[%c0_18, %c0_19] : memref<512x256xf32, #tpu.memory_space<vmem>>, vector<512x256xf32>
    %cst_20 = arith.constant dense<0.000000e+00> : vector<2x256xf32>
    %42 = tpu.matmul %40, %41, %cst_20 {dimension_numbers = #tpu.dot_dimension_numbers<[1], [0], [0], [1], [0, 0, 1, 1], [], []>} : vector<2x512xf32>, vector<512x256xf32>, vector<2x256xf32> -> vector<2x256xf32>
    %43 = vector.extract_strided_slice %2 {offsets = [3, 0], sizes = [1, 256], strides = [1, 1]} : vector<16x512xf32> to vector<1x256xf32>
    %44 = vector.broadcast %43 : vector<1x256xf32> to vector<2x256xf32>
    %45 = arith.addf %42, %44 : vector<2x256xf32>
    %46 = vector.extract_strided_slice %2 {offsets = [4, 0], sizes = [1, 256], strides = [1, 1]} : vector<16x512xf32> to vector<1x256xf32>
    %47 = vector.extract_strided_slice %2 {offsets = [5, 0], sizes = [1, 256], strides = [1, 1]} : vector<16x512xf32> to vector<1x256xf32>
    %cst_21 = arith.constant dense<0.000000e+00> : vector<2xf32>
    %48 = vector.multi_reduction <add>, %45, %cst_21 [1] : vector<2x256xf32> to vector<2xf32>
    %49 = vector.shape_cast %48 : vector<2xf32> to vector<2x1xf32>
    %cst_22 = arith.constant 2.560000e+02 : f32
    %50 = vector.broadcast %cst_22 : f32 to vector<2x1xf32>
    %51 = arith.divf %49, %50 : vector<2x1xf32>
    %52 = vector.broadcast %51 : vector<2x1xf32> to vector<2x256xf32>
    %53 = arith.subf %45, %52 : vector<2x256xf32>
    %54 = arith.mulf %53, %53 : vector<2x256xf32>
    %cst_23 = arith.constant dense<0.000000e+00> : vector<2xf32>
    %55 = vector.multi_reduction <add>, %54, %cst_23 [1] : vector<2x256xf32> to vector<2xf32>
    %56 = vector.shape_cast %55 : vector<2xf32> to vector<2x1xf32>
    %cst_24 = arith.constant 2.560000e+02 : f32
    %57 = vector.broadcast %cst_24 : f32 to vector<2x1xf32>
    %58 = arith.divf %56, %57 : vector<2x1xf32>
    %cst_25 = arith.constant 9.99999974E-6 : f32
    %59 = vector.broadcast %cst_25 : f32 to vector<2x1xf32>
    %60 = arith.addf %58, %59 : vector<2x1xf32>
    %61 = math.rsqrt %60 : vector<2x1xf32>
    %62 = vector.broadcast %61 : vector<2x1xf32> to vector<2x256xf32>
    %63 = arith.mulf %53, %62 : vector<2x256xf32>
    %64 = vector.broadcast %46 : vector<1x256xf32> to vector<2x256xf32>
    %65 = arith.mulf %63, %64 : vector<2x256xf32>
    %66 = vector.broadcast %47 : vector<1x256xf32> to vector<2x256xf32>
    %67 = arith.addf %65, %66 : vector<2x256xf32>
    %cst_26 = arith.constant 0.000000e+00 : f32
    %68 = vector.broadcast %cst_26 : f32 to vector<2x256xf32>
    %69 = arith.cmpf ogt, %67, %68 : vector<2x256xf32>
    %cst_27 = arith.constant 0.000000e+00 : f32
    %70 = vector.broadcast %cst_27 : f32 to vector<2x256xf32>
    %71 = arith.minimumf %67, %70 : vector<2x256xf32>
    %72 = math.exp %71 : vector<2x256xf32>
    %cst_28 = arith.constant 1.000000e+00 : f32
    %73 = vector.broadcast %cst_28 : f32 to vector<2x256xf32>
    %74 = arith.subf %72, %73 : vector<2x256xf32>
    %75 = arith.select %69, %67, %74 : vector<2x256xi1>, vector<2x256xf32>
    %c0_29 = arith.constant 0 : index
    %c0_30 = arith.constant 0 : index
    %76 = vector.load %arg5[%c0_29, %c0_30] : memref<256x128xf32, #tpu.memory_space<vmem>>, vector<256x128xf32>
    %cst_31 = arith.constant dense<0.000000e+00> : vector<2x128xf32>
    %77 = tpu.matmul %75, %76, %cst_31 {dimension_numbers = #tpu.dot_dimension_numbers<[1], [0], [0], [1], [0, 0, 1, 1], [], []>} : vector<2x256xf32>, vector<256x128xf32>, vector<2x128xf32> -> vector<2x128xf32>
    %78 = vector.extract_strided_slice %2 {offsets = [6, 0], sizes = [1, 128], strides = [1, 1]} : vector<16x512xf32> to vector<1x128xf32>
    %79 = vector.broadcast %78 : vector<1x128xf32> to vector<2x128xf32>
    %80 = arith.addf %77, %79 : vector<2x128xf32>
    %81 = vector.extract_strided_slice %2 {offsets = [7, 0], sizes = [1, 128], strides = [1, 1]} : vector<16x512xf32> to vector<1x128xf32>
    %82 = vector.extract_strided_slice %2 {offsets = [8, 0], sizes = [1, 128], strides = [1, 1]} : vector<16x512xf32> to vector<1x128xf32>
    %cst_32 = arith.constant dense<0.000000e+00> : vector<2xf32>
    %83 = vector.multi_reduction <add>, %80, %cst_32 [1] : vector<2x128xf32> to vector<2xf32>
    %84 = vector.shape_cast %83 : vector<2xf32> to vector<2x1xf32>
    %cst_33 = arith.constant 1.280000e+02 : f32
    %85 = vector.broadcast %cst_33 : f32 to vector<2x1xf32>
    %86 = arith.divf %84, %85 : vector<2x1xf32>
    %87 = vector.broadcast %86 : vector<2x1xf32> to vector<2x128xf32>
    %88 = arith.subf %80, %87 : vector<2x128xf32>
    %89 = arith.mulf %88, %88 : vector<2x128xf32>
    %cst_34 = arith.constant dense<0.000000e+00> : vector<2xf32>
    %90 = vector.multi_reduction <add>, %89, %cst_34 [1] : vector<2x128xf32> to vector<2xf32>
    %91 = vector.shape_cast %90 : vector<2xf32> to vector<2x1xf32>
    %cst_35 = arith.constant 1.280000e+02 : f32
    %92 = vector.broadcast %cst_35 : f32 to vector<2x1xf32>
    %93 = arith.divf %91, %92 : vector<2x1xf32>
    %cst_36 = arith.constant 9.99999974E-6 : f32
    %94 = vector.broadcast %cst_36 : f32 to vector<2x1xf32>
    %95 = arith.addf %93, %94 : vector<2x1xf32>
    %96 = math.rsqrt %95 : vector<2x1xf32>
    %97 = vector.broadcast %96 : vector<2x1xf32> to vector<2x128xf32>
    %98 = arith.mulf %88, %97 : vector<2x128xf32>
    %99 = vector.broadcast %81 : vector<1x128xf32> to vector<2x128xf32>
    %100 = arith.mulf %98, %99 : vector<2x128xf32>
    %101 = vector.broadcast %82 : vector<1x128xf32> to vector<2x128xf32>
    %102 = arith.addf %100, %101 : vector<2x128xf32>
    %cst_37 = arith.constant 0.000000e+00 : f32
    %103 = vector.broadcast %cst_37 : f32 to vector<2x128xf32>
    %104 = arith.cmpf ogt, %102, %103 : vector<2x128xf32>
    %cst_38 = arith.constant 0.000000e+00 : f32
    %105 = vector.broadcast %cst_38 : f32 to vector<2x128xf32>
    %106 = arith.minimumf %102, %105 : vector<2x128xf32>
    %107 = math.exp %106 : vector<2x128xf32>
    %cst_39 = arith.constant 1.000000e+00 : f32
    %108 = vector.broadcast %cst_39 : f32 to vector<2x128xf32>
    %109 = arith.subf %107, %108 : vector<2x128xf32>
    %110 = arith.select %104, %102, %109 : vector<2x128xi1>, vector<2x128xf32>
    %c0_40 = arith.constant 0 : index
    %c0_41 = arith.constant 0 : index
    %111 = vector.load %arg6[%c0_40, %c0_41] : memref<128x23xf32, #tpu.memory_space<vmem>>, vector<128x23xf32>
    %cst_42 = arith.constant dense<0.000000e+00> : vector<2x23xf32>
    %112 = tpu.matmul %110, %111, %cst_42 {dimension_numbers = #tpu.dot_dimension_numbers<[1], [0], [0], [1], [0, 0, 1, 1], [], []>} : vector<2x128xf32>, vector<128x23xf32>, vector<2x23xf32> -> vector<2x23xf32>
    %113 = vector.extract_strided_slice %2 {offsets = [9, 0], sizes = [1, 23], strides = [1, 1]} : vector<16x512xf32> to vector<1x23xf32>
    %114 = vector.broadcast %113 : vector<1x23xf32> to vector<2x23xf32>
    %115 = arith.addf %112, %114 : vector<2x23xf32>
    %c0_43 = arith.constant 0 : index
    %c0_44 = arith.constant 0 : index
    %116 = vector.load %arg7[%c0_43, %c0_44] : memref<23x512xf32, #tpu.memory_space<vmem>>, vector<23x512xf32>
    %cst_45 = arith.constant dense<0.000000e+00> : vector<2x512xf32>
    %117 = tpu.matmul %115, %116, %cst_45 {dimension_numbers = #tpu.dot_dimension_numbers<[1], [0], [0], [1], [0, 0, 1, 1], [], []>} : vector<2x23xf32>, vector<23x512xf32>, vector<2x512xf32> -> vector<2x512xf32>
    %c0_46 = arith.constant 0 : index
    %c0_47 = arith.constant 0 : index
    %118 = vector.load %arg8[%c0_46, %c0_47] : memref<48x512xf32, #tpu.memory_space<vmem>>, vector<48x512xf32>
    %cst_48 = arith.constant dense<0.000000e+00> : vector<2x512xf32>
    %119 = tpu.matmul %0, %118, %cst_48 {dimension_numbers = #tpu.dot_dimension_numbers<[1], [0], [0], [1], [0, 0, 1, 1], [], []>} : vector<2x48xf32>, vector<48x512xf32>, vector<2x512xf32> -> vector<2x512xf32>
    %120 = arith.addf %117, %119 : vector<2x512xf32>
    %121 = vector.extract_strided_slice %2 {offsets = [10, 0], sizes = [1, 512], strides = [1, 1]} : vector<16x512xf32> to vector<1x512xf32>
    %122 = vector.broadcast %121 : vector<1x512xf32> to vector<2x512xf32>
    %123 = arith.addf %120, %122 : vector<2x512xf32>
    %cst_49 = arith.constant 0.000000e+00 : f32
    %124 = vector.broadcast %cst_49 : f32 to vector<2x512xf32>
    %125 = arith.cmpf ogt, %123, %124 : vector<2x512xf32>
    %cst_50 = arith.constant 0.000000e+00 : f32
    %126 = vector.broadcast %cst_50 : f32 to vector<2x512xf32>
    %127 = arith.minimumf %123, %126 : vector<2x512xf32>
    %128 = math.exp %127 : vector<2x512xf32>
    %cst_51 = arith.constant 1.000000e+00 : f32
    %129 = vector.broadcast %cst_51 : f32 to vector<2x512xf32>
    %130 = arith.subf %128, %129 : vector<2x512xf32>
    %131 = arith.select %125, %123, %130 : vector<2x512xi1>, vector<2x512xf32>
    %c0_52 = arith.constant 0 : index
    %c0_53 = arith.constant 0 : index
    %132 = vector.load %arg9[%c0_52, %c0_53] : memref<512x256xf32, #tpu.memory_space<vmem>>, vector<512x256xf32>
    %cst_54 = arith.constant dense<0.000000e+00> : vector<2x256xf32>
    %133 = tpu.matmul %131, %132, %cst_54 {dimension_numbers = #tpu.dot_dimension_numbers<[1], [0], [0], [1], [0, 0, 1, 1], [], []>} : vector<2x512xf32>, vector<512x256xf32>, vector<2x256xf32> -> vector<2x256xf32>
    %134 = vector.extract_strided_slice %2 {offsets = [11, 0], sizes = [1, 256], strides = [1, 1]} : vector<16x512xf32> to vector<1x256xf32>
    %135 = vector.broadcast %134 : vector<1x256xf32> to vector<2x256xf32>
    %136 = arith.addf %133, %135 : vector<2x256xf32>
    %cst_55 = arith.constant 0.000000e+00 : f32
    %137 = vector.broadcast %cst_55 : f32 to vector<2x256xf32>
    %138 = arith.cmpf ogt, %136, %137 : vector<2x256xf32>
    %cst_56 = arith.constant 0.000000e+00 : f32
    %139 = vector.broadcast %cst_56 : f32 to vector<2x256xf32>
    %140 = arith.minimumf %136, %139 : vector<2x256xf32>
    %141 = math.exp %140 : vector<2x256xf32>
    %cst_57 = arith.constant 1.000000e+00 : f32
    %142 = vector.broadcast %cst_57 : f32 to vector<2x256xf32>
    %143 = arith.subf %141, %142 : vector<2x256xf32>
    %144 = arith.select %138, %136, %143 : vector<2x256xi1>, vector<2x256xf32>
    %c0_58 = arith.constant 0 : index
    %c0_59 = arith.constant 0 : index
    %145 = vector.load %arg10[%c0_58, %c0_59] : memref<256x128xf32, #tpu.memory_space<vmem>>, vector<256x128xf32>
    %cst_60 = arith.constant dense<0.000000e+00> : vector<2x128xf32>
    %146 = tpu.matmul %144, %145, %cst_60 {dimension_numbers = #tpu.dot_dimension_numbers<[1], [0], [0], [1], [0, 0, 1, 1], [], []>} : vector<2x256xf32>, vector<256x128xf32>, vector<2x128xf32> -> vector<2x128xf32>
    %147 = vector.extract_strided_slice %2 {offsets = [12, 0], sizes = [1, 128], strides = [1, 1]} : vector<16x512xf32> to vector<1x128xf32>
    %148 = vector.broadcast %147 : vector<1x128xf32> to vector<2x128xf32>
    %149 = arith.addf %146, %148 : vector<2x128xf32>
    %cst_61 = arith.constant 0.000000e+00 : f32
    %150 = vector.broadcast %cst_61 : f32 to vector<2x128xf32>
    %151 = arith.cmpf ogt, %149, %150 : vector<2x128xf32>
    %cst_62 = arith.constant 0.000000e+00 : f32
    %152 = vector.broadcast %cst_62 : f32 to vector<2x128xf32>
    %153 = arith.minimumf %149, %152 : vector<2x128xf32>
    %154 = math.exp %153 : vector<2x128xf32>
    %cst_63 = arith.constant 1.000000e+00 : f32
    %155 = vector.broadcast %cst_63 : f32 to vector<2x128xf32>
    %156 = arith.subf %154, %155 : vector<2x128xf32>
    %157 = arith.select %151, %149, %156 : vector<2x128xi1>, vector<2x128xf32>
    %c0_64 = arith.constant 0 : index
    %c0_65 = arith.constant 0 : index
    %158 = vector.load %arg11[%c0_64, %c0_65] : memref<128x12xf32, #tpu.memory_space<vmem>>, vector<128x12xf32>
    %cst_66 = arith.constant dense<0.000000e+00> : vector<2x12xf32>
    %159 = tpu.matmul %157, %158, %cst_66 {dimension_numbers = #tpu.dot_dimension_numbers<[1], [0], [0], [1], [0, 0, 1, 1], [], []>} : vector<2x128xf32>, vector<128x12xf32>, vector<2x12xf32> -> vector<2x12xf32>
    %160 = vector.extract_strided_slice %2 {offsets = [13, 0], sizes = [1, 12], strides = [1, 1]} : vector<16x512xf32> to vector<1x12xf32>
    %161 = vector.broadcast %160 : vector<1x12xf32> to vector<2x12xf32>
    %162 = arith.addf %159, %161 : vector<2x12xf32>
    %c0_67 = arith.constant 0 : index
    %c0_68 = arith.constant 0 : index
    %163 = vector.load %arg13[%c0_67, %c0_68] : memref<2x12xf32, #tpu.memory_space<vmem>>, vector<2x12xf32>
    tpu.vector_store %arg13[%c0_67, %c0_68], %162 {strides = array<i32>} : memref<2x12xf32, #tpu.memory_space<vmem>>, vector<2x12xf32>,
    return
  }
}

</mosaic_0001>

<llo_original>
// kernel: tpu_custom_call.1
$region0: #{tpu_custom_call.1}
  #allocation0 [shape = 'u32[]', space=smem, size = 0x4, offset = 0x4, fixed_abs, tag = 'smem constant byte address 0x4 - core index']
  #allocation1 [shape = 'u32[144,128]{1,0:T(1,128)}', space=vmem, size = 0x12000, scoped, tag = 'internal scratch']
  %s0 = inlined_call_operand.vmem [shape: f32[2,48], index: 0, kind: input, shape index: {}]
  %s1 = inlined_call_operand.vmem [shape: f32[2,480], index: 1, kind: input, shape index: {}]
  %s2 = inlined_call_operand.hbm [shape: f32[480,512], index: 2, kind: input, shape index: {}]
  %s3 = inlined_call_operand.hbm [shape: f32[48,512], index: 3, kind: input, shape index: {}]
  %s4 = inlined_call_operand.hbm [shape: f32[512,256], index: 4, kind: input, shape index: {}]
  %s5 = inlined_call_operand.vmem [shape: f32[256,128], index: 5, kind: input, shape index: {}]
  %s6 = inlined_call_operand.vmem [shape: f32[128,23], index: 6, kind: input, shape index: {}]
  %s7 = inlined_call_operand.hbm [shape: f32[23,512], index: 7, kind: input, shape index: {}]
  %s8 = inlined_call_operand.hbm [shape: f32[48,512], index: 8, kind: input, shape index: {}]
  %s9 = inlined_call_operand.hbm [shape: f32[512,256], index: 9, kind: input, shape index: {}]
  %s10 = inlined_call_operand.hbm [shape: f32[256,128], index: 10, kind: input, shape index: {}]
  %s11 = inlined_call_operand.vmem [shape: f32[128,12], index: 11, kind: input, shape index: {}]
  %s12 = inlined_call_operand.hbm [shape: f32[16,512], index: 12, kind: input, shape index: {}]
  %s13 = inlined_call_operand.hbm [shape: f32[2,12], index: 13, kind: output, shape index: {}]
  %s14 = sld [smem:[#allocation0]]
  $region94: #{tpu_custom_call.1} parent=0
    _
  %s16 = ssub.s32 1, %s14
  %s17 = scalar_select 0, %s16, %s14
  $region1: #{tpu_custom_call.1} parent=0
    #allocation2 [shape = 'u8[983040]{0}', space=vmem, size = 0xf0000, scoped, tag = 'input window, operand 2, single buffered']
    #allocation3 [shape = 's32[1]{0}', space=sflag, size = 0x4, scoped, tag = 'scoped memory for tpu_custom_call.1']
    #allocation4 [shape = 's32[1]{0}', space=sflag, size = 0x4, scoped, tag = 'scoped memory for tpu_custom_call.1']
    #allocation5 [shape = 'u8[98304]{0}', space=vmem, size = 0x18000, scoped, tag = 'input window, operand 3, single buffered']
    #allocation6 [shape = 's32[1]{0}', space=sflag, size = 0x4, scoped, tag = 'scoped memory for tpu_custom_call.1']
    #allocation7 [shape = 'u8[524288]{0}', space=vmem, size = 0x80000, scoped, tag = 'input window, operand 4, single buffered']
    #allocation8 [shape = 'u8[49152]{0}', space=vmem, size = 0xc000, scoped, tag = 'input window, operand 7, single buffered']
    #allocation9 [shape = 's32[1]{0}', space=sflag, size = 0x4, scoped, tag = 'scoped memory for tpu_custom_call.1']
    #allocation10 [shape = 'u8[98304]{0}', space=vmem, size = 0x18000, scoped, tag = 'input window, operand 8, single buffered']
    #allocation11 [shape = 'u8[524288]{0}', space=vmem, size = 0x80000, scoped, tag = 'input window, operand 9, single buffered']
    #allocation12 [shape = 's32[1]{0}', space=sflag, size = 0x4, scoped, tag = 'scoped memory for tpu_custom_call.1']
    #allocation13 [shape = 'u8[131072]{0}', space=vmem, size = 0x20000, scoped, tag = 'input window, operand 10, single buffered']
    #allocation14 [shape = 'u8[32768]{0}', space=vmem, size = 0x8000, scoped, tag = 'input window, operand 12, single buffered']
    #allocation15 [shape = 's32[1]{0}', space=sflag, size = 0x4, scoped, tag = 'scoped memory for tpu_custom_call.1']
    #allocation16 [shape = 'u8[1024]{0}', space=vmem, size = 0x400, scoped, tag = 'output window, operand 0, single buffered']
    %18 = vsyncpa [#allocation3], 0
    %19 = vsyncpa [#allocation6], 0
    %20 = vsyncpa [#allocation9], 0
    %21 = vsyncpa [#allocation12], 0
    %22 = vsyncpa [#allocation15], 0
    %23 = vsyncpa [#allocation4], 0
    // Predicated region
    $region2: #{tpu_custom_call.1} parent=1 // pred_check
      _
    $region3: #{tpu_custom_call.1} parent=1 // pred_check_branch
      %25 = sbr.rel (0) target = $region5
    $region4: #{tpu_custom_call.1} parent=1 // pred_region
      _
    $region5: #{tpu_custom_call.1} parent=1 // pred_fallthru
      _
    // Predicated region
    $region6: #{tpu_custom_call.1} parent=1 // pred_check
      _
    $region7: #{tpu_custom_call.1} parent=1 // pred_check_branch
      %27 = sbr.rel (0) target = $region9
    $region8: #{tpu_custom_call.1} parent=1 // pred_region
      _
    $region9: #{tpu_custom_call.1} parent=1 // pred_fallthru
      _
    // Predicated region
    $region10: #{tpu_custom_call.1} parent=1 // pred_check
      _
    $region11: #{tpu_custom_call.1} parent=1 // pred_check_branch
      %29 = sbr.rel (0) target = $region13
    $region12: #{tpu_custom_call.1} parent=1 // pred_region
      %s31 = ssub.s32 30720, 30720
      %32 = vsyncadd [#allocation3], %s31
      %s33 = sshll.u32 [#allocation2], 4
      %s34 = int_to_ptr.vmem [resolvable:$true] %s33
      %39 = dma.hbm_to_vmem [thread:$0]  %s2, 30720, %s34, [#allocation3], 512, 512, 32
    $region13: #{tpu_custom_call.1} parent=1 // pred_fallthru
      _
    // Predicated region
    $region14: #{tpu_custom_call.1} parent=1 // pred_check
      _
    $region15: #{tpu_custom_call.1} parent=1 // pred_check_branch
      %41 = sbr.rel (0) target = $region17
    $region16: #{tpu_custom_call.1} parent=1 // pred_region
      %s43 = ssub.s32 3072, 3072
      %44 = vsyncadd [#allocation6], %s43
      %s45 = sshll.u32 [#allocation5], 4
      %s46 = int_to_ptr.vmem [resolvable:$true] %s45
      %51 = dma.hbm_to_vmem [thread:$0]  %s3, 3072, %s46, [#allocation6], 512, 512, 32
    $region17: #{tpu_custom_call.1} parent=1 // pred_fallthru
      _
    // Predicated region
    $region18: #{tpu_custom_call.1} parent=1 // pred_check
      _
    $region19: #{tpu_custom_call.1} parent=1 // pred_check_branch
      %53 = sbr.rel (0) target = $region21
    $region20: #{tpu_custom_call.1} parent=1 // pred_region
      %s55 = ssub.s32 16384, 16384
      %56 = vsyncadd [#allocation6], %s55
      %s57 = sshll.u32 [#allocation7], 4
      %s58 = int_to_ptr.vmem [resolvable:$true] %s57
      %63 = dma.hbm_to_vmem [thread:$0]  %s4, 16384, %s58, [#allocation6], 256, 256, 16
    $region21: #{tpu_custom_call.1} parent=1 // pred_fallthru
      _
    // Predicated region
    $region22: #{tpu_custom_call.1} parent=1 // pred_check
      _
    $region23: #{tpu_custom_call.1} parent=1 // pred_check_branch
      %65 = sbr.rel (0) target = $region25
    $region24: #{tpu_custom_call.1} parent=1 // pred_region
      _
    $region25: #{tpu_custom_call.1} parent=1 // pred_fallthru
      _
    // Predicated region
    $region26: #{tpu_custom_call.1} parent=1 // pred_check
      _
    $region27: #{tpu_custom_call.1} parent=1 // pred_check_branch
      %67 = sbr.rel (0) target = $region29
    $region28: #{tpu_custom_call.1} parent=1 // pred_region
      _
    $region29: #{tpu_custom_call.1} parent=1 // pred_fallthru
      _
    // Predicated region
    $region30: #{tpu_custom_call.1} parent=1 // pred_check
      _
    $region31: #{tpu_custom_call.1} parent=1 // pred_check_branch
      %69 = sbr.rel (0) target = $region33
    $region32: #{tpu_custom_call.1} parent=1 // pred_region
      %s71 = ssub.s32 1536, 1536
      %72 = vsyncadd [#allocation9], %s71
      %s73 = sshll.u32 [#allocation8], 4
      %s74 = int_to_ptr.vmem [resolvable:$true] %s73
      %79 = dma.hbm_to_vmem [thread:$0]  %s7, 1536, %s74, [#allocation9], 512, 512, 32
    $region33: #{tpu_custom_call.1} parent=1 // pred_fallthru
      _
    // Predicated region
    $region34: #{tpu_custom_call.1} parent=1 // pred_check
      _
    $region35: #{tpu_custom_call.1} parent=1 // pred_check_branch
      %81 = sbr.rel (0) target = $region37
    $region36: #{tpu_custom_call.1} parent=1 // pred_region
      %s83 = ssub.s32 3072, 3072
      %84 = vsyncadd [#allocation9], %s83
      %s85 = sshll.u32 [#allocation10], 4
      %s86 = int_to_ptr.vmem [resolvable:$true] %s85
      %91 = dma.hbm_to_vmem [thread:$0]  %s8, 3072, %s86, [#allocation9], 512, 512, 32
    $region37: #{tpu_custom_call.1} parent=1 // pred_fallthru
      _
    // Predicated region
    $region38: #{tpu_custom_call.1} parent=1 // pred_check
      _
    $region39: #{tpu_custom_call.1} parent=1 // pred_check_branch
      %93 = sbr.rel (0) target = $region41
    $region40: #{tpu_custom_call.1} parent=1 // pred_region
      %s95 = ssub.s32 16384, 16384
      %96 = vsyncadd [#allocation12], %s95
      %s97 = sshll.u32 [#allocation11], 4
      %s98 = int_to_ptr.vmem [resolvable:$true] %s97
      %103 = dma.hbm_to_vmem [thread:$0]  %s9, 16384, %s98, [#allocation12], 256, 256, 16
    $region41: #{tpu_custom_call.1} parent=1 // pred_fallthru
      _
    // Predicated region
    $region42: #{tpu_custom_call.1} parent=1 // pred_check
      _
    $region43: #{tpu_custom_call.1} parent=1 // pred_check_branch
      %105 = sbr.rel (0) target = $region45
    $region44: #{tpu_custom_call.1} parent=1 // pred_region
      %s107 = ssub.s32 4096, 4096
      %108 = vsyncadd [#allocation12], %s107
      %s109 = sshll.u32 [#allocation13], 4
      %s110 = int_to_ptr.vmem [resolvable:$true] %s109
      %115 = dma.hbm_to_vmem [thread:$0]  %s10, 4096, %s110, [#allocation12], 128, 128, 8
    $region45: #{tpu_custom_call.1} parent=1 // pred_fallthru
      _
    // Predicated region
    $region46: #{tpu_custom_call.1} parent=1 // pred_check
      _
    $region47: #{tpu_custom_call.1} parent=1 // pred_check_branch
      %117 = sbr.rel (0) target = $region49
    $region48: #{tpu_custom_call.1} parent=1 // pred_region
      _
    $region49: #{tpu_custom_call.1} parent=1 // pred_fallthru
      _
    // Predicated region
    $region50: #{tpu_custom_call.1} parent=1 // pred_check
      _
    $region51: #{tpu_custom_call.1} parent=1 // pred_check_branch
      %119 = sbr.rel (0) target = $region53
    $region52: #{tpu_custom_call.1} parent=1 // pred_region
      %s121 = ssub.s32 1024, 1024
      %122 = vsyncadd [#allocation15], %s121
      %s123 = sshll.u32 [#allocation14], 4
      %s124 = int_to_ptr.vmem [resolvable:$true] %s123
      %129 = dma.hbm_to_vmem [thread:$0]  %s12, 1024, %s124, [#allocation15], 512, 512, 32
    $region53: #{tpu_custom_call.1} parent=1 // pred_fallthru
      _
    // Predicated region
    $region54: #{tpu_custom_call.1} parent=1 // pred_check
      _
    $region55: #{tpu_custom_call.1} parent=1 // pred_check_branch
      %131 = sbr.rel (0) target = $region57
    $region56: #{tpu_custom_call.1} parent=1 // pred_region
      %132 = dma.done [#allocation3], 30720
    $region57: #{tpu_custom_call.1} parent=1 // pred_fallthru
      _
    // Predicated region
    $region58: #{tpu_custom_call.1} parent=1 // pred_check
      _
    $region59: #{tpu_custom_call.1} parent=1 // pred_check_branch
      %134 = sbr.rel (0) target = $region61
    $region60: #{tpu_custom_call.1} parent=1 // pred_region
      %135 = dma.done [#allocation6], 3072
    $region61: #{tpu_custom_call.1} parent=1 // pred_fallthru
      _
    // Predicated region
    $region62: #{tpu_custom_call.1} parent=1 // pred_check
      _
    $region63: #{tpu_custom_call.1} parent=1 // pred_check_branch
      %137 = sbr.rel (0) target = $region65
    $region64: #{tpu_custom_call.1} parent=1 // pred_region
      %138 = dma.done [#allocation6], 16384
    $region65: #{tpu_custom_call.1} parent=1 // pred_fallthru
      _
    // Predicated region
    $region66: #{tpu_custom_call.1} parent=1 // pred_check
      _
    $region67: #{tpu_custom_call.1} parent=1 // pred_check_branch
      %140 = sbr.rel (0) target = $region69
    $region68: #{tpu_custom_call.1} parent=1 // pred_region
      %141 = dma.done [#allocation9], 1536
    $region69: #{tpu_custom_call.1} parent=1 // pred_fallthru
      _
    // Predicated region
    $region70: #{tpu_custom_call.1} parent=1 // pred_check
      _
    $region71: #{tpu_custom_call.1} parent=1 // pred_check_branch
      %143 = sbr.rel (0) target = $region73
    $region72: #{tpu_custom_call.1} parent=1 // pred_region
      %144 = dma.done [#allocation9], 3072
    $region73: #{tpu_custom_call.1} parent=1 // pred_fallthru
      _
    // Predicated region
    $region74: #{tpu_custom_call.1} parent=1 // pred_check
      _
    $region75: #{tpu_custom_call.1} parent=1 // pred_check_branch
      %146 = sbr.rel (0) target = $region77
    $region76: #{tpu_custom_call.1} parent=1 // pred_region
      %147 = dma.done [#allocation12], 16384
    $region77: #{tpu_custom_call.1} parent=1 // pred_fallthru
      _
    // Predicated region
    $region78: #{tpu_custom_call.1} parent=1 // pred_check
      _
    $region79: #{tpu_custom_call.1} parent=1 // pred_check_branch
      %149 = sbr.rel (0) target = $region81
    $region80: #{tpu_custom_call.1} parent=1 // pred_region
      %150 = dma.done [#allocation12], 4096
    $region81: #{tpu_custom_call.1} parent=1 // pred_fallthru
      _
    // Predicated region
    $region82: #{tpu_custom_call.1} parent=1 // pred_check
      _
    $region83: #{tpu_custom_call.1} parent=1 // pred_check_branch
      %152 = sbr.rel (0) target = $region85
    $region84: #{tpu_custom_call.1} parent=1 // pred_region
      %153 = dma.done [#allocation15], 1024
    $region85: #{tpu_custom_call.1} parent=1 // pred_fallthru
      _
    %v154 = vld [vmem:[%s0] sm:$0x3]
    %v155 = vld [vmem:[%s1] sm:$0xff]
    %v156 = vld [vmem:[#allocation14] sm:$0xff]
    %v157 = vld [vmem:[#allocation14 + $0x8] sm:$0xff]
    %v158 = vld [vmem:[#allocation14 + $0x10] sm:$0xff]
    %v159 = vld [vmem:[#allocation14 + $0x18] sm:$0xff]
    %v160 = vld [vmem:[#allocation14 + $0x20] sm:$0xff]
    %v161 = vld [vmem:[#allocation14 + $0x28] sm:$0xff]
    %v162 = vld [vmem:[#allocation14 + $0x30] sm:$0xff]
    %v163 = vld [vmem:[#allocation14 + $0x38] sm:$0xff]
    %v164 = vld [vmem:[#allocation2] sm:$0xff]
    %v165 = vld [vmem:[#allocation2 + $0x8] sm:$0xff]
    %v166 = vld [vmem:[#allocation2 + $0x10] sm:$0xff]
    %v167 = vld [vmem:[#allocation2 + $0x18] sm:$0xff]
    %v168 = vld [vmem:[#allocation2 + $0x20] sm:$0xff]
    %v169 = vld [vmem:[#allocation2 + $0x28] sm:$0xff]
    %v170 = vld [vmem:[#allocation2 + $0x30] sm:$0xff]
    %v171 = vld [vmem:[#allocation2 + $0x38] sm:$0xff]
    %v172 = vld [vmem:[#allocation2 + $0x40] sm:$0xff]
    %v173 = vld [vmem:[#allocation2 + $0x48] sm:$0xff]
    %v174 = vld [vmem:[#allocation2 + $0x50] sm:$0xff]
    %v175 = vld [vmem:[#allocation2 + $0x58] sm:$0xff]
    %v176 = vld [vmem:[#allocation2 + $0x60] sm:$0xff]
    %v177 = vld [vmem:[#allocation2 + $0x68] sm:$0xff]
    %v178 = vld [vmem:[#allocation2 + $0x70] sm:$0xff]
    %v179 = vld [vmem:[#allocation2 + $0x78] sm:$0xff]
    %v180 = vld [vmem:[#allocation2 + $0x80] sm:$0xff]
    %v181 = vld [vmem:[#allocation2 + $0x88] sm:$0xff]
    %v182 = vld [vmem:[#allocation2 + $0x90] sm:$0xff]
    %v183 = vld [vmem:[#allocation2 + $0x98] sm:$0xff]
    %v184 = vld [vmem:[#allocation2 + $0xa0] sm:$0xff]
    %v185 = vld [vmem:[#allocation2 + $0xa8] sm:$0xff]
    %v186 = vld [vmem:[#allocation2 + $0xb0] sm:$0xff]
    %v187 = vld [vmem:[#allocation2 + $0xb8] sm:$0xff]
    %v188 = vld [vmem:[#allocation2 + $0xc0] sm:$0xff]
    %v189 = vld [vmem:[#allocation2 + $0xc8] sm:$0xff]
    %v190 = vld [vmem:[#allocation2 + $0xd0] sm:$0xff]
    %v191 = vld [vmem:[#allocation2 + $0xd8] sm:$0xff]
    %v192 = vld [vmem:[#allocation2 + $0xe0] sm:$0xff]
    %v193 = vld [vmem:[#allocation2 + $0xe8] sm:$0xff]
    %v194 = vld [vmem:[#allocation2 + $0xf0] sm:$0xff]
    %v195 = vld [vmem:[#allocation2 + $0xf8] sm:$0xff]
    %v196 = vld [vmem:[#allocation2 + $0x100] sm:$0xff]
    %v197 = vld [vmem:[#allocation2 + $0x108] sm:$0xff]
    %v198 = vld [vmem:[#allocation2 + $0x110] sm:$0xff]
    %v199 = vld [vmem:[#allocation2 + $0x118] sm:$0xff]
    %v200 = vld [vmem:[#allocation2 + $0x120] sm:$0xff]
    %v201 = vld [vmem:[#allocation2 + $0x128] sm:$0xff]
    %v202 = vld [vmem:[#allocation2 + $0x130] sm:$0xff]
    %v203 = vld [vmem:[#allocation2 + $0x138] sm:$0xff]
    %v204 = vld [vmem:[#allocation2 + $0x140] sm:$0xff]
    %v205 = vld [vmem:[#allocation2 + $0x148] sm:$0xff]
    %v206 = vld [vmem:[#allocation2 + $0x150] sm:$0xff]
    %v207 = vld [vmem:[#allocation2 + $0x158] sm:$0xff]
    %v208 = vld [vmem:[#allocation2 + $0x160] sm:$0xff]
    %v209 = vld [vmem:[#allocation2 + $0x168] sm:$0xff]
    %v210 = vld [vmem:[#allocation2 + $0x170] sm:$0xff]
    %v211 = vld [vmem:[#allocation2 + $0x178] sm:$0xff]
    %v212 = vld [vmem:[#allocation2 + $0x180] sm:$0xff]
    %v213 = vld [vmem:[#allocation2 + $0x188] sm:$0xff]
    %v214 = vld [vmem:[#allocation2 + $0x190] sm:$0xff]
    %v215 = vld [vmem:[#allocation2 + $0x198] sm:$0xff]
    %v216 = vld [vmem:[#allocation2 + $0x1a0] sm:$0xff]
    %v217 = vld [vmem:[#allocation2 + $0x1a8] sm:$0xff]
    %v218 = vld [vmem:[#allocation2 + $0x1b0] sm:$0xff]
    %v219 = vld [vmem:[#allocation2 + $0x1b8] sm:$0xff]
    %v220 = vld [vmem:[#allocation2 + $0x1c0] sm:$0xff]
    %v221 = vld [vmem:[#allocation2 + $0x1c8] sm:$0xff]
    %v222 = vld [vmem:[#allocation2 + $0x1d0] sm:$0xff]
    %v223 = vld [vmem:[#allocation2 + $0x1d8] sm:$0xff]
    %v224 = vld [vmem:[#allocation2 + $0x1e0] sm:$0xff]
    %v225 = vld [vmem:[#allocation2 + $0x1e8] sm:$0xff]
    %v226 = vld [vmem:[#allocation2 + $0x1f0] sm:$0xff]
    %v227 = vld [vmem:[#allocation2 + $0x1f8] sm:$0xff]
    %v228 = vld [vmem:[#allocation2 + $0x200] sm:$0xff]
    %v229 = vld [vmem:[#allocation2 + $0x208] sm:$0xff]
    %v230 = vld [vmem:[#allocation2 + $0x210] sm:$0xff]
    %v231 = vld [vmem:[#allocation2 + $0x218] sm:$0xff]
    %v232 = vld [vmem:[#allocation2 + $0x220] sm:$0xff]
    %v233 = vld [vmem:[#allocation2 + $0x228] sm:$0xff]
    %v234 = vld [vmem:[#allocation2 + $0x230] sm:$0xff]
    %v235 = vld [vmem:[#allocation2 + $0x238] sm:$0xff]
    %v236 = vld [vmem:[#allocation2 + $0x240] sm:$0xff]
    %v237 = vld [vmem:[#allocation2 + $0x248] sm:$0xff]
    %v238 = vld [vmem:[#allocation2 + $0x250] sm:$0xff]
    %v239 = vld [vmem:[#allocation2 + $0x258] sm:$0xff]
    %v240 = vld [vmem:[#allocation2 + $0x260] sm:$0xff]
    %v241 = vld [vmem:[#allocation2 + $0x268] sm:$0xff]
    %v242 = vld [vmem:[#allocation2 + $0x270] sm:$0xff]
    %v243 = vld [vmem:[#allocation2 + $0x278] sm:$0xff]
    %v244 = vld [vmem:[#allocation2 + $0x280] sm:$0xff]
    %v245 = vld [vmem:[#allocation2 + $0x288] sm:$0xff]
    %v246 = vld [vmem:[#allocation2 + $0x290] sm:$0xff]
    %v247 = vld [vmem:[#allocation2 + $0x298] sm:$0xff]
    %v248 = vld [vmem:[#allocation2 + $0x2a0] sm:$0xff]
    %v249 = vld [vmem:[#allocation2 + $0x2a8] sm:$0xff]
    %v250 = vld [vmem:[#allocation2 + $0x2b0] sm:$0xff]
    %v251 = vld [vmem:[#allocation2 + $0x2b8] sm:$0xff]
    %v252 = vld [vmem:[#allocation2 + $0x2c0] sm:$0xff]
    %v253 = vld [vmem:[#allocation2 + $0x2c8] sm:$0xff]
    %v254 = vld [vmem:[#allocation2 + $0x2d0] sm:$0xff]
    %v255 = vld [vmem:[#allocation2 + $0x2d8] sm:$0xff]
    %v256 = vld [vmem:[#allocation2 + $0x2e0] sm:$0xff]
    %v257 = vld [vmem:[#allocation2 + $0x2e8] sm:$0xff]
    %v258 = vld [vmem:[#allocation2 + $0x2f0] sm:$0xff]
    %v259 = vld [vmem:[#allocation2 + $0x2f8] sm:$0xff]
    %v260 = vld [vmem:[#allocation2 + $0x300] sm:$0xff]
    %v261 = vld [vmem:[#allocation2 + $0x308] sm:$0xff]
    %v262 = vld [vmem:[#allocation2 + $0x310] sm:$0xff]
    %v263 = vld [vmem:[#allocation2 + $0x318] sm:$0xff]
    %v264 = vld [vmem:[#allocation2 + $0x320] sm:$0xff]
    %v265 = vld [vmem:[#allocation2 + $0x328] sm:$0xff]
    %v266 = vld [vmem:[#allocation2 + $0x330] sm:$0xff]
    %v267 = vld [vmem:[#allocation2 + $0x338] sm:$0xff]
    %v268 = vld [vmem:[#allocation2 + $0x340] sm:$0xff]
    %v269 = vld [vmem:[#allocation2 + $0x348] sm:$0xff]
    %v270 = vld [vmem:[#allocation2 + $0x350] sm:$0xff]
    %v271 = vld [vmem:[#allocation2 + $0x358] sm:$0xff]
    %v272 = vld [vmem:[#allocation2 + $0x360] sm:$0xff]
    %v273 = vld [vmem:[#allocation2 + $0x368] sm:$0xff]
    %v274 = vld [vmem:[#allocation2 + $0x370] sm:$0xff]
    %v275 = vld [vmem:[#allocation2 + $0x378] sm:$0xff]
    %v276 = vld [vmem:[#allocation2 + $0x380] sm:$0xff]
    %v277 = vld [vmem:[#allocation2 + $0x388] sm:$0xff]
    %v278 = vld [vmem:[#allocation2 + $0x390] sm:$0xff]
    %v279 = vld [vmem:[#allocation2 + $0x398] sm:$0xff]
    %v280 = vld [vmem:[#allocation2 + $0x3a0] sm:$0xff]
    %v281 = vld [vmem:[#allocation2 + $0x3a8] sm:$0xff]
    %v282 = vld [vmem:[#allocation2 + $0x3b0] sm:$0xff]
    %v283 = vld [vmem:[#allocation2 + $0x3b8] sm:$0xff]
    %v284 = vld [vmem:[#allocation2 + $0x3c0] sm:$0xff]
    %v285 = vld [vmem:[#allocation2 + $0x3c8] sm:$0xff]
    %v286 = vld [vmem:[#allocation2 + $0x3d0] sm:$0xff]
    %v287 = vld [vmem:[#allocation2 + $0x3d8] sm:$0xff]
    %v288 = vld [vmem:[#allocation2 + $0x3e0] sm:$0xff]
    %v289 = vld [vmem:[#allocation2 + $0x3e8] sm:$0xff]
    %v290 = vld [vmem:[#allocation2 + $0x3f0] sm:$0xff]
    %v291 = vld [vmem:[#allocation2 + $0x3f8] sm:$0xff]
    %v292 = vld [vmem:[#allocation2 + $0x400] sm:$0xff]
    %v293 = vld [vmem:[#allocation2 + $0x408] sm:$0xff]
    %v294 = vld [vmem:[#allocation2 + $0x410] sm:$0xff]
    %v295 = vld [vmem:[#allocation2 + $0x418] sm:$0xff]
    %v296 = vld [vmem:[#allocation2 + $0x420] sm:$0xff]
    %v297 = vld [vmem:[#allocation2 + $0x428] sm:$0xff]
    %v298 = vld [vmem:[#allocation2 + $0x430] sm:$0xff]
    %v299 = vld [vmem:[#allocation2 + $0x438] sm:$0xff]
    %v300 = vld [vmem:[#allocation2 + $0x440] sm:$0xff]
    %v301 = vld [vmem:[#allocation2 + $0x448] sm:$0xff]
    %v302 = vld [vmem:[#allocation2 + $0x450] sm:$0xff]
    %v303 = vld [vmem:[#allocation2 + $0x458] sm:$0xff]
    %v304 = vld [vmem:[#allocation2 + $0x460] sm:$0xff]
    %v305 = vld [vmem:[#allocation2 + $0x468] sm:$0xff]
    %v306 = vld [vmem:[#allocation2 + $0x470] sm:$0xff]
    %v307 = vld [vmem:[#allocation2 + $0x478] sm:$0xff]
    %v308 = vld [vmem:[#allocation2 + $0x480] sm:$0xff]
    %v309 = vld [vmem:[#allocation2 + $0x488] sm:$0xff]
    %v310 = vld [vmem:[#allocation2 + $0x490] sm:$0xff]
    %v311 = vld [vmem:[#allocation2 + $0x498] sm:$0xff]
    %v312 = vld [vmem:[#allocation2 + $0x4a0] sm:$0xff]
    %v313 = vld [vmem:[#allocation2 + $0x4a8] sm:$0xff]
    %v314 = vld [vmem:[#allocation2 + $0x4b0] sm:$0xff]
    %v315 = vld [vmem:[#allocation2 + $0x4b8] sm:$0xff]
    %v316 = vld [vmem:[#allocation2 + $0x4c0] sm:$0xff]
    %v317 = vld [vmem:[#allocation2 + $0x4c8] sm:$0xff]
    %v318 = vld [vmem:[#allocation2 + $0x4d0] sm:$0xff]
    %v319 = vld [vmem:[#allocation2 + $0x4d8] sm:$0xff]
    %v320 = vld [vmem:[#allocation2 + $0x4e0] sm:$0xff]
    %v321 = vld [vmem:[#allocation2 + $0x4e8] sm:$0xff]
    %v322 = vld [vmem:[#allocation2 + $0x4f0] sm:$0xff]
    %v323 = vld [vmem:[#allocation2 + $0x4f8] sm:$0xff]
    %v324 = vld [vmem:[#allocation2 + $0x500] sm:$0xff]
    %v325 = vld [vmem:[#allocation2 + $0x508] sm:$0xff]
    %v326 = vld [vmem:[#allocation2 + $0x510] sm:$0xff]
    %v327 = vld [vmem:[#allocation2 + $0x518] sm:$0xff]
    %v328 = vld [vmem:[#allocation2 + $0x520] sm:$0xff]
    %v329 = vld [vmem:[#allocation2 + $0x528] sm:$0xff]
    %v330 = vld [vmem:[#allocation2 + $0x530] sm:$0xff]
    %v331 = vld [vmem:[#allocation2 + $0x538] sm:$0xff]
    %v332 = vld [vmem:[#allocation2 + $0x540] sm:$0xff]
    %v333 = vld [vmem:[#allocation2 + $0x548] sm:$0xff]
    %v334 = vld [vmem:[#allocation2 + $0x550] sm:$0xff]
    %v335 = vld [vmem:[#allocation2 + $0x558] sm:$0xff]
    %v336 = vld [vmem:[#allocation2 + $0x560] sm:$0xff]
    %v337 = vld [vmem:[#allocation2 + $0x568] sm:$0xff]
    %v338 = vld [vmem:[#allocation2 + $0x570] sm:$0xff]
    %v339 = vld [vmem:[#allocation2 + $0x578] sm:$0xff]
    %v340 = vld [vmem:[#allocation2 + $0x580] sm:$0xff]
    %v341 = vld [vmem:[#allocation2 + $0x588] sm:$0xff]
    %v342 = vld [vmem:[#allocation2 + $0x590] sm:$0xff]
    %v343 = vld [vmem:[#allocation2 + $0x598] sm:$0xff]
    %v344 = vld [vmem:[#allocation2 + $0x5a0] sm:$0xff]
    %v345 = vld [vmem:[#allocation2 + $0x5a8] sm:$0xff]
    %v346 = vld [vmem:[#allocation2 + $0x5b0] sm:$0xff]
    %v347 = vld [vmem:[#allocation2 + $0x5b8] sm:$0xff]
    %v348 = vld [vmem:[#allocation2 + $0x5c0] sm:$0xff]
    %v349 = vld [vmem:[#allocation2 + $0x5c8] sm:$0xff]
    %v350 = vld [vmem:[#allocation2 + $0x5d0] sm:$0xff]
    %v351 = vld [vmem:[#allocation2 + $0x5d8] sm:$0xff]
    %v352 = vld [vmem:[#allocation2 + $0x5e0] sm:$0xff]
    %v353 = vld [vmem:[#allocation2 + $0x5e8] sm:$0xff]
    %v354 = vld [vmem:[#allocation2 + $0x5f0] sm:$0xff]
    %v355 = vld [vmem:[#allocation2 + $0x5f8] sm:$0xff]
    %v356 = vld [vmem:[#allocation2 + $0x600] sm:$0xff]
    %v357 = vld [vmem:[#allocation2 + $0x608] sm:$0xff]
    %v358 = vld [vmem:[#allocation2 + $0x610] sm:$0xff]
    %v359 = vld [vmem:[#allocation2 + $0x618] sm:$0xff]
    %v360 = vld [vmem:[#allocation2 + $0x620] sm:$0xff]
    %v361 = vld [vmem:[#allocation2 + $0x628] sm:$0xff]
    %v362 = vld [vmem:[#allocation2 + $0x630] sm:$0xff]
    %v363 = vld [vmem:[#allocation2 + $0x638] sm:$0xff]
    %v364 = vld [vmem:[#allocation2 + $0x640] sm:$0xff]
    %v365 = vld [vmem:[#allocation2 + $0x648] sm:$0xff]
    %v366 = vld [vmem:[#allocation2 + $0x650] sm:$0xff]
    %v367 = vld [vmem:[#allocation2 + $0x658] sm:$0xff]
    %v368 = vld [vmem:[#allocation2 + $0x660] sm:$0xff]
    %v369 = vld [vmem:[#allocation2 + $0x668] sm:$0xff]
    %v370 = vld [vmem:[#allocation2 + $0x670] sm:$0xff]
    %v371 = vld [vmem:[#allocation2 + $0x678] sm:$0xff]
    %v372 = vld [vmem:[#allocation2 + $0x680] sm:$0xff]
    %v373 = vld [vmem:[#allocation2 + $0x688] sm:$0xff]
    %v374 = vld [vmem:[#allocation2 + $0x690] sm:$0xff]
    %v375 = vld [vmem:[#allocation2 + $0x698] sm:$0xff]
    %v376 = vld [vmem:[#allocation2 + $0x6a0] sm:$0xff]
    %v377 = vld [vmem:[#allocation2 + $0x6a8] sm:$0xff]
    %v378 = vld [vmem:[#allocation2 + $0x6b0] sm:$0xff]
    %v379 = vld [vmem:[#allocation2 + $0x6b8] sm:$0xff]
    %v380 = vld [vmem:[#allocation2 + $0x6c0] sm:$0xff]
    %v381 = vld [vmem:[#allocation2 + $0x6c8] sm:$0xff]
    %v382 = vld [vmem:[#allocation2 + $0x6d0] sm:$0xff]
    %v383 = vld [vmem:[#allocation2 + $0x6d8] sm:$0xff]
    %v384 = vld [vmem:[#allocation2 + $0x6e0] sm:$0xff]
    %v385 = vld [vmem:[#allocation2 + $0x6e8] sm:$0xff]
    %v386 = vld [vmem:[#allocation2 + $0x6f0] sm:$0xff]
    %v387 = vld [vmem:[#allocation2 + $0x6f8] sm:$0xff]
    %v388 = vld [vmem:[#allocation2 + $0x700] sm:$0xff]
    %v389 = vld [vmem:[#allocation2 + $0x708] sm:$0xff]
    %v390 = vld [vmem:[#allocation2 + $0x710] sm:$0xff]
    %v391 = vld [vmem:[#allocation2 + $0x718] sm:$0xff]
    %v392 = vld [vmem:[#allocation2 + $0x720] sm:$0xff]
    %v393 = vld [vmem:[#allocation2 + $0x728] sm:$0xff]
    %v394 = vld [vmem:[#allocation2 + $0x730] sm:$0xff]
    %v395 = vld [vmem:[#allocation2 + $0x738] sm:$0xff]
    %v396 = vld [vmem:[#allocation2 + $0x740] sm:$0xff]
    %v397 = vld [vmem:[#allocation2 + $0x748] sm:$0xff]
    %v398 = vld [vmem:[#allocation2 + $0x750] sm:$0xff]
    %v399 = vld [vmem:[#allocation2 + $0x758] sm:$0xff]
    %v400 = vld [vmem:[#allocation2 + $0x760] sm:$0xff]
    %v401 = vld [vmem:[#allocation2 + $0x768] sm:$0xff]
    %v402 = vld [vmem:[#allocation2 + $0x770] sm:$0xff]
    %v403 = vld [vmem:[#allocation2 + $0x778] sm:$0xff]
    %v404 = vld [vmem:[#allocation5] sm:$0xff]
    %v405 = vld [vmem:[#allocation5 + $0x8] sm:$0xff]
    %v406 = vld [vmem:[#allocation5 + $0x10] sm:$0xff]
    %v407 = vld [vmem:[#allocation5 + $0x18] sm:$0xff]
    %v408 = vld [vmem:[#allocation5 + $0x20] sm:$0xff]
    %v409 = vld [vmem:[#allocation5 + $0x28] sm:$0xff]
    %v410 = vld [vmem:[#allocation5 + $0x30] sm:$0xff]
    %v411 = vld [vmem:[#allocation5 + $0x38] sm:$0xff]
    %v412 = vld [vmem:[#allocation5 + $0x40] sm:$0xff]
    %v413 = vld [vmem:[#allocation5 + $0x48] sm:$0xff]
    %v414 = vld [vmem:[#allocation5 + $0x50] sm:$0xff]
    %v415 = vld [vmem:[#allocation5 + $0x58] sm:$0xff]
    %v416 = vld [vmem:[#allocation5 + $0x60] sm:$0xff]
    %v417 = vld [vmem:[#allocation5 + $0x68] sm:$0xff]
    %v418 = vld [vmem:[#allocation5 + $0x70] sm:$0xff]
    %v419 = vld [vmem:[#allocation5 + $0x78] sm:$0xff]
    %v420 = vld [vmem:[#allocation5 + $0x80] sm:$0xff]
    %v421 = vld [vmem:[#allocation5 + $0x88] sm:$0xff]
    %v422 = vld [vmem:[#allocation5 + $0x90] sm:$0xff]
    %v423 = vld [vmem:[#allocation5 + $0x98] sm:$0xff]
    %v424 = vld [vmem:[#allocation5 + $0xa0] sm:$0xff]
    %v425 = vld [vmem:[#allocation5 + $0xa8] sm:$0xff]
    %v426 = vld [vmem:[#allocation5 + $0xb0] sm:$0xff]
    %v427 = vld [vmem:[#allocation5 + $0xb8] sm:$0xff]
    %vm428 = vcmask 392192
    %v430 = vsel %vm428, %v154, 0
    %432 = vmatprep.subr.mxu0 0.0
    %433 = vmatpush1.msra.mxu0 0.0
    %434 = vmatprep.subr.mxu0 0.0
    %435 = vmatpush1.msra.mxu0 0.0
    %436 = vmatprep.subr.mxu0 0.0
    %437 = vmatpush1.msra.mxu0 0.0
    %438 = vmatprep.subr.mxu0 0.0
    %439 = vmatpush1.msra.mxu0 0.0
    %440 = vmatprep.subr.mxu0 0.0
    %441 = vmatpush1.msra.mxu0 0.0
    %442 = vmatprep.subr.mxu0 0.0
    %443 = vmatpush1.msra.mxu0 0.0
    %444 = vmatprep.subr.mxu0 0.0
    %445 = vmatpush1.msra.mxu0 0.0
    %446 = vmatprep.subr.mxu0 0.0
    %447 = vmatpush1.msra.mxu0 0.0
    %448 = vmatprep.subr.mxu0 0.0
    %449 = vmatpush1.msra.mxu0 0.0
    %450 = vmatprep.subr.mxu0 0.0
    %451 = vmatpush1.msra.mxu0 0.0
    %452 = vmatprep.subr.mxu0 %v425
    %453 = vmatpush1.msra.mxu0 %v424
    %454 = vmatprep.subr.mxu0 %v421
    %455 = vmatpush1.msra.mxu0 %v420
    %456 = vmatprep.subr.mxu0 %v417
    %457 = vmatpush1.msra.mxu0 %v416
    %458 = vmatprep.subr.mxu0 %v413
    %459 = vmatpush1.msra.mxu0 %v412
    %460 = vmatprep.subr.mxu0 %v409
    %461 = vmatpush1.msra.mxu0 %v408
    %462 = vmatprep.subr.mxu0 %v405
    %463 = vmatpush1.msra.mxu0 %v404
    %464 = vmatprep.subr.mxu0 0.0
    %465 = vmatpush2.msra.mxu0 0.0
    %466 = vmatprep.subr.mxu0 0.0
    %467 = vmatpush2.msra.mxu0 0.0
    %468 = vmatprep.subr.mxu0 0.0
    %469 = vmatpush2.msra.mxu0 0.0
    %470 = vmatprep.subr.mxu0 0.0
    %471 = vmatpush2.msra.mxu0 0.0
    %472 = vmatprep.subr.mxu0 0.0
    %473 = vmatpush2.msra.mxu0 0.0
    %474 = vmatprep.subr.mxu0 0.0
    %475 = vmatpush2.msra.mxu0 0.0
    %476 = vmatprep.subr.mxu0 0.0
    %477 = vmatpush2.msra.mxu0 0.0
    %478 = vmatprep.subr.mxu0 0.0
    %479 = vmatpush2.msra.mxu0 0.0
    %480 = vmatprep.subr.mxu0 0.0
    %481 = vmatpush2.msra.mxu0 0.0
    %482 = vmatprep.subr.mxu0 0.0
    %483 = vmatpush2.msra.mxu0 0.0
    %484 = vmatprep.subr.mxu0 0.0
    %485 = vmatpush2.msra.mxu0 0.0
    %486 = vmatprep.subr.mxu0 0.0
    %487 = vmatpush2.msra.mxu0 0.0
    %488 = vmatprep.subr.mxu0 0.0
    %489 = vmatpush2.msra.mxu0 0.0
    %490 = vmatprep.subr.mxu0 0.0
    %491 = vmatpush2.msra.mxu0 0.0
    %492 = vmatprep.subr.mxu0 0.0
    %493 = vmatpush2.msra.mxu0 0.0
    %494 = vmatprep.subr.mxu0 0.0
    %495 = vmatpush2.msra.mxu0 0.0
    %496 = vmatprep.mubr.f32.mxu0 0.0
    %497 = vmatmul.mubr.f32.gmra.mxu0 %v430
    %v498 = vpop.f32.mrf.mxu0
    %v499 = vadd.f32 0.0, %v498
    %v500 = vpop.f32.mrf.mxu0
    %v501 = vadd.f32 0.0, %v500
    %502 = vdwg.mxu0
    %503 = vmatprep.subr.mxu0 0.0
    %504 = vmatpush1.msra.mxu0 0.0
    %505 = vmatprep.subr.mxu0 0.0
    %506 = vmatpush1.msra.mxu0 0.0
    %507 = vmatprep.subr.mxu0 0.0
    %508 = vmatpush1.msra.mxu0 0.0
    %509 = vmatprep.subr.mxu0 0.0
    %510 = vmatpush1.msra.mxu0 0.0
    %511 = vmatprep.subr.mxu0 0.0
    %512 = vmatpush1.msra.mxu0 0.0
    %513 = vmatprep.subr.mxu0 0.0
    %514 = vmatpush1.msra.mxu0 0.0
    %515 = vmatprep.subr.mxu0 0.0
    %516 = vmatpush1.msra.mxu0 0.0
    %517 = vmatprep.subr.mxu0 0.0
    %518 = vmatpush1.msra.mxu0 0.0
    %519 = vmatprep.subr.mxu0 0.0
    %520 = vmatpush1.msra.mxu0 0.0
    %521 = vmatprep.subr.mxu0 0.0
    %522 = vmatpush1.msra.mxu0 0.0
    %523 = vmatprep.subr.mxu0 %v427
    %524 = vmatpush1.msra.mxu0 %v426
    %525 = vmatprep.subr.mxu0 %v423
    %526 = vmatpush1.msra.mxu0 %v422
    %527 = vmatprep.subr.mxu0 %v419
    %528 = vmatpush1.msra.mxu0 %v418
    %529 = vmatprep.subr.mxu0 %v415
    %530 = vmatpush1.msra.mxu0 %v414
    %531 = vmatprep.subr.mxu0 %v411
    %532 = vmatpush1.msra.mxu0 %v410
    %533 = vmatprep.subr.mxu0 %v407
    %534 = vmatpush1.msra.mxu0 %v406
    %535 = vmatprep.subr.mxu0 0.0
    %536 = vmatpush2.msra.mxu0 0.0
    %537 = vmatprep.subr.mxu0 0.0
    %538 = vmatpush2.msra.mxu0 0.0
    %539 = vmatprep.subr.mxu0 0.0
    %540 = vmatpush2.msra.mxu0 0.0
    %541 = vmatprep.subr.mxu0 0.0
    %542 = vmatpush2.msra.mxu0 0.0
    %543 = vmatprep.subr.mxu0 0.0
    %544 = vmatpush2.msra.mxu0 0.0
    %545 = vmatprep.subr.mxu0 0.0
    %546 = vmatpush2.msra.mxu0 0.0
    %547 = vmatprep.subr.mxu0 0.0
    %548 = vmatpush2.msra.mxu0 0.0
    %549 = vmatprep.subr.mxu0 0.0
    %550 = vmatpush2.msra.mxu0 0.0
    %551 = vmatprep.subr.mxu0 0.0
    %552 = vmatpush2.msra.mxu0 0.0
    %553 = vmatprep.subr.mxu0 0.0
    %554 = vmatpush2.msra.mxu0 0.0
    %555 = vmatprep.subr.mxu0 0.0
    %556 = vmatpush2.msra.mxu0 0.0
    %557 = vmatprep.subr.mxu0 0.0
    %558 = vmatpush2.msra.mxu0 0.0
    %559 = vmatprep.subr.mxu0 0.0
    %560 = vmatpush2.msra.mxu0 0.0
    %561 = vmatprep.subr.mxu0 0.0
    %562 = vmatpush2.msra.mxu0 0.0
    %563 = vmatprep.subr.mxu0 0.0
    %564 = vmatpush2.msra.mxu0 0.0
    %565 = vmatprep.subr.mxu0 0.0
    %566 = vmatpush2.msra.mxu0 0.0
    %567 = vmatprep.mubr.f32.mxu0 0.0
    %568 = vmatmul.mubr.f32.gmra.mxu0 %v430
    %v569 = vpop.f32.mrf.mxu0
    %v570 = vadd.f32 0.0, %v569
    %v571 = vpop.f32.mrf.mxu0
    %v572 = vadd.f32 0.0, %v571
    %573 = vdwg.mxu0
    %v575 = vcombine.high %v155, %v155
    %v577 = vunpack.c.l.s4 1983009808
    %v578 = vunpack.c.0.s8 %v577
    %v579 = vlaneseq
    %v580 = vshrl.u32 %v579, 7
    %v581 = vsub.s32 %v578, %v580
    %v582 = vrot.slane %v155, %v581
    %v584 = vunpack.c.l.s4 1983009808
    %v585 = vunpack.c.0.s8 %v584
    %v586 = vlaneseq
    %v587 = vshrl.u32 %v586, 7
    %v588 = vsub.s32 %v585, %v587
    %v589 = vrot.slane %v575, %v588
    %v590 = vcombine.high %v582, %v582
    %v591 = vcombine.high %v589, %v589
    %vm595 = vcmask 785408
    %v596 = vsel %vm595, %v591, 0
    %598 = vmatprep.subr.mxu0 %v225
    %599 = vmatpush1.msra.mxu0 %v224
    %600 = vmatprep.subr.mxu0 %v221
    %601 = vmatpush1.msra.mxu0 %v220
    %602 = vmatprep.subr.mxu0 %v217
    %603 = vmatpush1.msra.mxu0 %v216
    %604 = vmatprep.subr.mxu0 %v213
    %605 = vmatpush1.msra.mxu0 %v212
    %606 = vmatprep.subr.mxu0 %v209
    %607 = vmatpush1.msra.mxu0 %v208
    %608 = vmatprep.subr.mxu0 %v205
    %609 = vmatpush1.msra.mxu0 %v204
    %610 = vmatprep.subr.mxu0 %v201
    %611 = vmatpush1.msra.mxu0 %v200
    %612 = vmatprep.subr.mxu0 %v197
    %613 = vmatpush1.msra.mxu0 %v196
    %614 = vmatprep.subr.mxu0 %v193
    %615 = vmatpush1.msra.mxu0 %v192
    %616 = vmatprep.subr.mxu0 %v189
    %617 = vmatpush1.msra.mxu0 %v188
    %618 = vmatprep.subr.mxu0 %v185
    %619 = vmatpush1.msra.mxu0 %v184
    %620 = vmatprep.subr.mxu0 %v181
    %621 = vmatpush1.msra.mxu0 %v180
    %622 = vmatprep.subr.mxu0 %v177
    %623 = vmatpush1.msra.mxu0 %v176
    %624 = vmatprep.subr.mxu0 %v173
    %625 = vmatpush1.msra.mxu0 %v172
    %626 = vmatprep.subr.mxu0 %v169
    %627 = vmatpush1.msra.mxu0 %v168
    %628 = vmatprep.subr.mxu0 %v165
    %629 = vmatpush1.msra.mxu0 %v164
    %630 = vmatprep.subr.mxu0 %v289
    %631 = vmatpush2.msra.mxu0 %v288
    %632 = vmatprep.subr.mxu0 %v285
    %633 = vmatpush2.msra.mxu0 %v284
    %634 = vmatprep.subr.mxu0 %v281
    %635 = vmatpush2.msra.mxu0 %v280
    %636 = vmatprep.subr.mxu0 %v277
    %637 = vmatpush2.msra.mxu0 %v276
    %638 = vmatprep.subr.mxu0 %v273
    %639 = vmatpush2.msra.mxu0 %v272
    %640 = vmatprep.subr.mxu0 %v269
    %641 = vmatpush2.msra.mxu0 %v268
    %642 = vmatprep.subr.mxu0 %v265
    %643 = vmatpush2.msra.mxu0 %v264
    %644 = vmatprep.subr.mxu0 %v261
    %645 = vmatpush2.msra.mxu0 %v260
    %646 = vmatprep.subr.mxu0 %v257
    %647 = vmatpush2.msra.mxu0 %v256
    %648 = vmatprep.subr.mxu0 %v253
    %649 = vmatpush2.msra.mxu0 %v252
    %650 = vmatprep.subr.mxu0 %v249
    %651 = vmatpush2.msra.mxu0 %v248
    %652 = vmatprep.subr.mxu0 %v245
    %653 = vmatpush2.msra.mxu0 %v244
    %654 = vmatprep.subr.mxu0 %v241
    %655 = vmatpush2.msra.mxu0 %v240
    %656 = vmatprep.subr.mxu0 %v237
    %657 = vmatpush2.msra.mxu0 %v236
    %658 = vmatprep.subr.mxu0 %v233
    %659 = vmatpush2.msra.mxu0 %v232
    %660 = vmatprep.subr.mxu0 %v229
    %661 = vmatpush2.msra.mxu0 %v228
    %662 = vmatprep.mubr.f32.mxu0 %v590
    %663 = vmatmul.mubr.f32.gmra.mxu0 %v582
    %v664 = vpop.f32.mrf.mxu0
    %v665 = vadd.f32 %v499, %v664
    %v666 = vpop.f32.mrf.mxu0
    %v667 = vadd.f32 %v501, %v666
    %668 = vdwg.mxu0
    %669 = vmatprep.subr.mxu0 %v353
    %670 = vmatpush1.msra.mxu0 %v352
    %671 = vmatprep.subr.mxu0 %v349
    %672 = vmatpush1.msra.mxu0 %v348
    %673 = vmatprep.subr.mxu0 %v345
    %674 = vmatpush1.msra.mxu0 %v344
    %675 = vmatprep.subr.mxu0 %v341
    %676 = vmatpush1.msra.mxu0 %v340
    %677 = vmatprep.subr.mxu0 %v337
    %678 = vmatpush1.msra.mxu0 %v336
    %679 = vmatprep.subr.mxu0 %v333
    %680 = vmatpush1.msra.mxu0 %v332
    %681 = vmatprep.subr.mxu0 %v329
    %682 = vmatpush1.msra.mxu0 %v328
    %683 = vmatprep.subr.mxu0 %v325
    %684 = vmatpush1.msra.mxu0 %v324
    %685 = vmatprep.subr.mxu0 %v321
    %686 = vmatpush1.msra.mxu0 %v320
    %687 = vmatprep.subr.mxu0 %v317
    %688 = vmatpush1.msra.mxu0 %v316
    %689 = vmatprep.subr.mxu0 %v313
    %690 = vmatpush1.msra.mxu0 %v312
    %691 = vmatprep.subr.mxu0 %v309
    %692 = vmatpush1.msra.mxu0 %v308
    %693 = vmatprep.subr.mxu0 %v305
    %694 = vmatpush1.msra.mxu0 %v304
    %695 = vmatprep.subr.mxu0 %v301
    %696 = vmatpush1.msra.mxu0 %v300
    %697 = vmatprep.subr.mxu0 %v297
    %698 = vmatpush1.msra.mxu0 %v296
    %699 = vmatprep.subr.mxu0 %v293
    %700 = vmatpush1.msra.mxu0 %v292
    %701 = vmatprep.subr.mxu0 0.0
    %702 = vmatpush2.msra.mxu0 0.0
    %703 = vmatprep.subr.mxu0 0.0
    %704 = vmatpush2.msra.mxu0 0.0
    %705 = vmatprep.subr.mxu0 0.0
    %706 = vmatpush2.msra.mxu0 0.0
    %707 = vmatprep.subr.mxu0 0.0
    %708 = vmatpush2.msra.mxu0 0.0
    %709 = vmatprep.subr.mxu0 %v401
    %710 = vmatpush2.msra.mxu0 %v400
    %711 = vmatprep.subr.mxu0 %v397
    %712 = vmatpush2.msra.mxu0 %v396
    %713 = vmatprep.subr.mxu0 %v393
    %714 = vmatpush2.msra.mxu0 %v392
    %715 = vmatprep.subr.mxu0 %v389
    %716 = vmatpush2.msra.mxu0 %v388
    %717 = vmatprep.subr.mxu0 %v385
    %718 = vmatpush2.msra.mxu0 %v384
    %719 = vmatprep.subr.mxu0 %v381
    %720 = vmatpush2.msra.mxu0 %v380
    %721 = vmatprep.subr.mxu0 %v377
    %722 = vmatpush2.msra.mxu0 %v376
    %723 = vmatprep.subr.mxu0 %v373
    %724 = vmatpush2.msra.mxu0 %v372
    %725 = vmatprep.subr.mxu0 %v369
    %726 = vmatpush2.msra.mxu0 %v368
    %727 = vmatprep.subr.mxu0 %v365
    %728 = vmatpush2.msra.mxu0 %v364
    %729 = vmatprep.subr.mxu0 %v361
    %730 = vmatpush2.msra.mxu0 %v360
    %731 = vmatprep.subr.mxu0 %v357
    %732 = vmatpush2.msra.mxu0 %v356
    %733 = vmatprep.mubr.f32.mxu0 %v596
    %734 = vmatmul.mubr.f32.gmra.mxu0 %v589
    %v735 = vpop.f32.mrf.mxu0
    %v736 = vadd.f32 %v665, %v735
    %v737 = vpop.f32.mrf.mxu0
    %v738 = vadd.f32 %v667, %v737
    %739 = vdwg.mxu0
    %740 = vmatprep.subr.mxu0 %v227
    %741 = vmatpush1.msra.mxu0 %v226
    %742 = vmatprep.subr.mxu0 %v223
    %743 = vmatpush1.msra.mxu0 %v222
    %744 = vmatprep.subr.mxu0 %v219
    %745 = vmatpush1.msra.mxu0 %v218
    %746 = vmatprep.subr.mxu0 %v215
    %747 = vmatpush1.msra.mxu0 %v214
    %748 = vmatprep.subr.mxu0 %v211
    %749 = vmatpush1.msra.mxu0 %v210
    %750 = vmatprep.subr.mxu0 %v207
    %751 = vmatpush1.msra.mxu0 %v206
    %752 = vmatprep.subr.mxu0 %v203
    %753 = vmatpush1.msra.mxu0 %v202
    %754 = vmatprep.subr.mxu0 %v199
    %755 = vmatpush1.msra.mxu0 %v198
    %756 = vmatprep.subr.mxu0 %v195
    %757 = vmatpush1.msra.mxu0 %v194
    %758 = vmatprep.subr.mxu0 %v191
    %759 = vmatpush1.msra.mxu0 %v190
    %760 = vmatprep.subr.mxu0 %v187
    %761 = vmatpush1.msra.mxu0 %v186
    %762 = vmatprep.subr.mxu0 %v183
    %763 = vmatpush1.msra.mxu0 %v182
    %764 = vmatprep.subr.mxu0 %v179
    %765 = vmatpush1.msra.mxu0 %v178
    %766 = vmatprep.subr.mxu0 %v175
    %767 = vmatpush1.msra.mxu0 %v174
    %768 = vmatprep.subr.mxu0 %v171
    %769 = vmatpush1.msra.mxu0 %v170
    %770 = vmatprep.subr.mxu0 %v167
    %771 = vmatpush1.msra.mxu0 %v166
    %772 = vmatprep.subr.mxu0 %v291
    %773 = vmatpush2.msra.mxu0 %v290
    %774 = vmatprep.subr.mxu0 %v287
    %775 = vmatpush2.msra.mxu0 %v286
    %776 = vmatprep.subr.mxu0 %v283
    %777 = vmatpush2.msra.mxu0 %v282
    %778 = vmatprep.subr.mxu0 %v279
    %779 = vmatpush2.msra.mxu0 %v278
    %780 = vmatprep.subr.mxu0 %v275
    %781 = vmatpush2.msra.mxu0 %v274
    %782 = vmatprep.subr.mxu0 %v271
    %783 = vmatpush2.msra.mxu0 %v270
    %784 = vmatprep.subr.mxu0 %v267
    %785 = vmatpush2.msra.mxu0 %v266
    %786 = vmatprep.subr.mxu0 %v263
    %787 = vmatpush2.msra.mxu0 %v262
    %788 = vmatprep.subr.mxu0 %v259
    %789 = vmatpush2.msra.mxu0 %v258
    %790 = vmatprep.subr.mxu0 %v255
    %791 = vmatpush2.msra.mxu0 %v254
    %792 = vmatprep.subr.mxu0 %v251
    %793 = vmatpush2.msra.mxu0 %v250
    %794 = vmatprep.subr.mxu0 %v247
    %795 = vmatpush2.msra.mxu0 %v246
    %796 = vmatprep.subr.mxu0 %v243
    %797 = vmatpush2.msra.mxu0 %v242
    %798 = vmatprep.subr.mxu0 %v239
    %799 = vmatpush2.msra.mxu0 %v238
    %800 = vmatprep.subr.mxu0 %v235
    %801 = vmatpush2.msra.mxu0 %v234
    %802 = vmatprep.subr.mxu0 %v231
    %803 = vmatpush2.msra.mxu0 %v230
    %804 = vmatprep.mubr.f32.mxu0 %v590
    %805 = vmatmul.mubr.f32.gmra.mxu0 %v582
    %v806 = vpop.f32.mrf.mxu0
    %v807 = vadd.f32 %v570, %v806
    %v808 = vpop.f32.mrf.mxu0
    %v809 = vadd.f32 %v572, %v808
    %810 = vdwg.mxu0
    %811 = vmatprep.subr.mxu0 %v355
    %812 = vmatpush1.msra.mxu0 %v354
    %813 = vmatprep.subr.mxu0 %v351
    %814 = vmatpush1.msra.mxu0 %v350
    %815 = vmatprep.subr.mxu0 %v347
    %816 = vmatpush1.msra.mxu0 %v346
    %817 = vmatprep.subr.mxu0 %v343
    %818 = vmatpush1.msra.mxu0 %v342
    %819 = vmatprep.subr.mxu0 %v339
    %820 = vmatpush1.msra.mxu0 %v338
    %821 = vmatprep.subr.mxu0 %v335
    %822 = vmatpush1.msra.mxu0 %v334
    %823 = vmatprep.subr.mxu0 %v331
    %824 = vmatpush1.msra.mxu0 %v330
    %825 = vmatprep.subr.mxu0 %v327
    %826 = vmatpush1.msra.mxu0 %v326
    %827 = vmatprep.subr.mxu0 %v323
    %828 = vmatpush1.msra.mxu0 %v322
    %829 = vmatprep.subr.mxu0 %v319
    %830 = vmatpush1.msra.mxu0 %v318
    %831 = vmatprep.subr.mxu0 %v315
    %832 = vmatpush1.msra.mxu0 %v314
    %833 = vmatprep.subr.mxu0 %v311
    %834 = vmatpush1.msra.mxu0 %v310
    %835 = vmatprep.subr.mxu0 %v307
    %836 = vmatpush1.msra.mxu0 %v306
    %837 = vmatprep.subr.mxu0 %v303
    %838 = vmatpush1.msra.mxu0 %v302
    %839 = vmatprep.subr.mxu0 %v299
    %840 = vmatpush1.msra.mxu0 %v298
    %841 = vmatprep.subr.mxu0 %v295
    %842 = vmatpush1.msra.mxu0 %v294
    %843 = vmatprep.subr.mxu0 0.0
    %844 = vmatpush2.msra.mxu0 0.0
    %845 = vmatprep.subr.mxu0 0.0
    %846 = vmatpush2.msra.mxu0 0.0
    %847 = vmatprep.subr.mxu0 0.0
    %848 = vmatpush2.msra.mxu0 0.0
    %849 = vmatprep.subr.mxu0 0.0
    %850 = vmatpush2.msra.mxu0 0.0
    %851 = vmatprep.subr.mxu0 %v403
    %852 = vmatpush2.msra.mxu0 %v402
    %853 = vmatprep.subr.mxu0 %v399
    %854 = vmatpush2.msra.mxu0 %v398
    %855 = vmatprep.subr.mxu0 %v395
    %856 = vmatpush2.msra.mxu0 %v394
    %857 = vmatprep.subr.mxu0 %v391
    %858 = vmatpush2.msra.mxu0 %v390
    %859 = vmatprep.subr.mxu0 %v387
    %860 = vmatpush2.msra.mxu0 %v386
    %861 = vmatprep.subr.mxu0 %v383
    %862 = vmatpush2.msra.mxu0 %v382
    %863 = vmatprep.subr.mxu0 %v379
    %864 = vmatpush2.msra.mxu0 %v378
    %865 = vmatprep.subr.mxu0 %v375
    %866 = vmatpush2.msra.mxu0 %v374
    %867 = vmatprep.subr.mxu0 %v371
    %868 = vmatpush2.msra.mxu0 %v370
    %869 = vmatprep.subr.mxu0 %v367
    %870 = vmatpush2.msra.mxu0 %v366
    %871 = vmatprep.subr.mxu0 %v363
    %872 = vmatpush2.msra.mxu0 %v362
    %873 = vmatprep.subr.mxu0 %v359
    %874 = vmatpush2.msra.mxu0 %v358
    %875 = vmatprep.mubr.f32.mxu0 %v596
    %876 = vmatmul.mubr.f32.gmra.mxu0 %v589
    %v877 = vpop.f32.mrf.mxu0
    %v878 = vadd.f32 %v807, %v877
    %v879 = vpop.f32.mrf.mxu0
    %v880 = vadd.f32 %v809, %v879
    %881 = vdwg.mxu0
    %v882 = vlaneseq
    %v883 = vshrl.u32 %v882, 7
    %v884 = vsub.s32 0, %v883
    %v885 = vrot.slane %v156, %v884
    %v886 = vlaneseq
    %v887 = vshrl.u32 %v886, 7
    %v888 = vsub.s32 0, %v887
    %v889 = vrot.slane %v157, %v888
    %v890 = vlaneseq
    %v891 = vshrl.u32 %v890, 7
    %v892 = vsub.s32 0, %v891
    %v893 = vrot.slane %v158, %v892
    %v894 = vlaneseq
    %v895 = vshrl.u32 %v894, 7
    %v896 = vsub.s32 0, %v895
    %v897 = vrot.slane %v159, %v896
    %v898 = vadd.f32 %v736, %v885
    %v899 = vadd.f32 %v738, %v889
    %v900 = vadd.f32 %v878, %v893
    %v901 = vadd.f32 %v880, %v897
    %vm902 = vcmask 1041408
    %v903 = vsel %vm902, %v898, 0.0
    %v904 = vsel %vm902, %v899, 0.0
    %v905 = vadd.f32 %v903, %v904
    %v906 = vsel %vm902, %v900, 0.0
    %v907 = vadd.f32 %v905, %v906
    %v908 = vsel %vm902, %v901, 0.0
    %v909 = vadd.f32 %v907, %v908
    %910 = vadd.xlane.f32.xlu0 %v909
    %v911 = vpop.xlane.xlu0 %910
    %v912 = vrcp.pop 512.0
    %v913 = vmul.f32 %v911, %v912
    %v914 = vsub.f32 %v898, %v913
    %v915 = vsub.f32 %v899, %v913
    %v916 = vsub.f32 %v900, %v913
    %v917 = vsub.f32 %v901, %v913
    %v918 = vmul.f32 %v914, %v914
    %v919 = vmul.f32 %v915, %v915
    %v920 = vmul.f32 %v916, %v916
    %v921 = vmul.f32 %v917, %v917
    %v922 = vsel %vm902, %v918, 0.0
    %v923 = vsel %vm902, %v919, 0.0
    %v924 = vadd.f32 %v922, %v923
    %v925 = vsel %vm902, %v920, 0.0
    %v926 = vadd.f32 %v924, %v925
    %v927 = vsel %vm902, %v921, 0.0
    %v928 = vadd.f32 %v926, %v927
    %929 = vadd.xlane.f32.xlu0 %v928
    %v930 = vpop.xlane.xlu0 %929
    %v931 = vmul.f32 %v930, %v912
    %v932 = vadd.f32 %v931, 1e-05
    %v933 = vrsqrt.pop %v932
    %v934 = vmul.f32 %v914, %v933
    %v935 = vmul.f32 %v915, %v933
    %v936 = vmul.f32 %v916, %v933
    %v937 = vmul.f32 %v917, %v933
    %v938 = vlaneseq
    %v939 = vshrl.u32 %v938, 7
    %v940 = vsub.s32 1, %v939
    %v941 = vrot.slane %v156, %v940
    %v942 = vlaneseq
    %v943 = vshrl.u32 %v942, 7
    %v944 = vsub.s32 1, %v943
    %v945 = vrot.slane %v157, %v944
    %v946 = vlaneseq
    %v947 = vshrl.u32 %v946, 7
    %v948 = vsub.s32 1, %v947
    %v949 = vrot.slane %v158, %v948
    %v950 = vlaneseq
    %v951 = vshrl.u32 %v950, 7
    %v952 = vsub.s32 1, %v951
    %v953 = vrot.slane %v159, %v952
    %v954 = vmul.f32 %v934, %v941
    %v955 = vmul.f32 %v935, %v945
    %v956 = vmul.f32 %v936, %v949
    %v957 = vmul.f32 %v937, %v953
    %v958 = vlaneseq
    %v959 = vshrl.u32 %v958, 7
    %v960 = vsub.s32 2, %v959
    %v961 = vrot.slane %v156, %v960
    %v962 = vlaneseq
    %v963 = vshrl.u32 %v962, 7
    %v964 = vsub.s32 2, %v963
    %v965 = vrot.slane %v157, %v964
    %v966 = vlaneseq
    %v967 = vshrl.u32 %v966, 7
    %v968 = vsub.s32 2, %v967
    %v969 = vrot.slane %v158, %v968
    %v970 = vlaneseq
    %v971 = vshrl.u32 %v970, 7
    %v972 = vsub.s32 2, %v971
    %v973 = vrot.slane %v159, %v972
    %v974 = vadd.f32 %v954, %v961
    %v975 = vadd.f32 %v955, %v965
    %v976 = vadd.f32 %v956, %v969
    %v977 = vadd.f32 %v957, %v973
    %vm978 = vcmp.gt.f32.partialorder %v974, 0.0
    %vm979 = vcmp.gt.f32.partialorder %v975, 0.0
    %vm980 = vcmp.gt.f32.partialorder %v976, 0.0
    %vm981 = vcmp.gt.f32.partialorder %v977, 0.0
    %v982 = vmin.f32 %v974, 0.0
    %v983 = vmin.f32 %v975, 0.0
    %v984 = vmin.f32 %v976, 0.0
    %v985 = vmin.f32 %v977, 0.0
    %v986 = vmul.f32 %v982, 1.442695
    %v987 = vpow.pop %v986
    %v988 = vmul.f32 %v983, 1.442695
    %v989 = vpow.pop %v988
    %v990 = vmul.f32 %v984, 1.442695
    %v991 = vpow.pop %v990
    %v992 = vmul.f32 %v985, 1.442695
    %v993 = vpow.pop %v992
    %v994 = vsub.f32 %v987, 1.0
    %v995 = vsub.f32 %v989, 1.0
    %v996 = vsub.f32 %v991, 1.0
    %v997 = vsub.f32 %v993, 1.0
    %v998 = vsel %vm978, %v974, %v994
    %v999 = vsel %vm979, %v975, %v995
    %v1000 = vsel %vm980, %v976, %v996
    %v1001 = vsel %vm981, %v977, %v997
    %v1002 = vld [vmem:[#allocation7] sm:$0xff]
    %v1003 = vld [vmem:[#allocation7 + $0x8] sm:$0xff]
    %v1004 = vld [vmem:[#allocation7 + $0x10] sm:$0xff]
    %v1005 = vld [vmem:[#allocation7 + $0x18] sm:$0xff]
    %v1006 = vld [vmem:[#allocation7 + $0x20] sm:$0xff]
    %v1007 = vld [vmem:[#allocation7 + $0x28] sm:$0xff]
    %v1008 = vld [vmem:[#allocation7 + $0x30] sm:$0xff]
    %v1009 = vld [vmem:[#allocation7 + $0x38] sm:$0xff]
    %v1010 = vld [vmem:[#allocation7 + $0x40] sm:$0xff]
    %v1011 = vld [vmem:[#allocation7 + $0x48] sm:$0xff]
    %v1012 = vld [vmem:[#allocation7 + $0x50] sm:$0xff]
    %v1013 = vld [vmem:[#allocation7 + $0x58] sm:$0xff]
    %v1014 = vld [vmem:[#allocation7 + $0x60] sm:$0xff]
    %v1015 = vld [vmem:[#allocation7 + $0x68] sm:$0xff]
    %v1016 = vld [vmem:[#allocation7 + $0x70] sm:$0xff]
    %v1017 = vld [vmem:[#allocation7 + $0x78] sm:$0xff]
    %v1018 = vld [vmem:[#allocation7 + $0x80] sm:$0xff]
    %v1019 = vld [vmem:[#allocation7 + $0x88] sm:$0xff]
    %v1020 = vld [vmem:[#allocation7 + $0x90] sm:$0xff]
    %v1021 = vld [vmem:[#allocation7 + $0x98] sm:$0xff]
    %v1022 = vld [vmem:[#allocation7 + $0xa0] sm:$0xff]
    %v1023 = vld [vmem:[#allocation7 + $0xa8] sm:$0xff]
    %v1024 = vld [vmem:[#allocation7 + $0xb0] sm:$0xff]
    %v1025 = vld [vmem:[#allocation7 + $0xb8] sm:$0xff]
    %v1026 = vld [vmem:[#allocation7 + $0xc0] sm:$0xff]
    %v1027 = vld [vmem:[#allocation7 + $0xc8] sm:$0xff]
    %v1028 = vld [vmem:[#allocation7 + $0xd0] sm:$0xff]
    %v1029 = vld [vmem:[#allocation7 + $0xd8] sm:$0xff]
    %v1030 = vld [vmem:[#allocation7 + $0xe0] sm:$0xff]
    %v1031 = vld [vmem:[#allocation7 + $0xe8] sm:$0xff]
    %v1032 = vld [vmem:[#allocation7 + $0xf0] sm:$0xff]
    %v1033 = vld [vmem:[#allocation7 + $0xf8] sm:$0xff]
    %v1034 = vld [vmem:[#allocation7 + $0x100] sm:$0xff]
    %v1035 = vld [vmem:[#allocation7 + $0x108] sm:$0xff]
    %v1036 = vld [vmem:[#allocation7 + $0x110] sm:$0xff]
    %v1037 = vld [vmem:[#allocation7 + $0x118] sm:$0xff]
    %v1038 = vld [vmem:[#allocation7 + $0x120] sm:$0xff]
    %v1039 = vld [vmem:[#allocation7 + $0x128] sm:$0xff]
    %v1040 = vld [vmem:[#allocation7 + $0x130] sm:$0xff]
    %v1041 = vld [vmem:[#allocation7 + $0x138] sm:$0xff]
    %v1042 = vld [vmem:[#allocation7 + $0x140] sm:$0xff]
    %v1043 = vld [vmem:[#allocation7 + $0x148] sm:$0xff]
    %v1044 = vld [vmem:[#allocation7 + $0x150] sm:$0xff]
    %v1045 = vld [vmem:[#allocation7 + $0x158] sm:$0xff]
    %v1046 = vld [vmem:[#allocation7 + $0x160] sm:$0xff]
    %v1047 = vld [vmem:[#allocation7 + $0x168] sm:$0xff]
    %v1048 = vld [vmem:[#allocation7 + $0x170] sm:$0xff]
    %v1049 = vld [vmem:[#allocation7 + $0x178] sm:$0xff]
    %v1050 = vld [vmem:[#allocation7 + $0x180] sm:$0xff]
    %v1051 = vld [vmem:[#allocation7 + $0x188] sm:$0xff]
    %v1052 = vld [vmem:[#allocation7 + $0x190] sm:$0xff]
    %v1053 = vld [vmem:[#allocation7 + $0x198] sm:$0xff]
    %v1054 = vld [vmem:[#allocation7 + $0x1a0] sm:$0xff]
    %v1055 = vld [vmem:[#allocation7 + $0x1a8] sm:$0xff]
    %v1056 = vld [vmem:[#allocation7 + $0x1b0] sm:$0xff]
    %v1057 = vld [vmem:[#allocation7 + $0x1b8] sm:$0xff]
    %v1058 = vld [vmem:[#allocation7 + $0x1c0] sm:$0xff]
    %v1059 = vld [vmem:[#allocation7 + $0x1c8] sm:$0xff]
    %v1060 = vld [vmem:[#allocation7 + $0x1d0] sm:$0xff]
    %v1061 = vld [vmem:[#allocation7 + $0x1d8] sm:$0xff]
    %v1062 = vld [vmem:[#allocation7 + $0x1e0] sm:$0xff]
    %v1063 = vld [vmem:[#allocation7 + $0x1e8] sm:$0xff]
    %v1064 = vld [vmem:[#allocation7 + $0x1f0] sm:$0xff]
    %v1065 = vld [vmem:[#allocation7 + $0x1f8] sm:$0xff]
    %v1066 = vld [vmem:[#allocation7 + $0x200] sm:$0xff]
    %v1067 = vld [vmem:[#allocation7 + $0x208] sm:$0xff]
    %v1068 = vld [vmem:[#allocation7 + $0x210] sm:$0xff]
    %v1069 = vld [vmem:[#allocation7 + $0x218] sm:$0xff]
    %v1070 = vld [vmem:[#allocation7 + $0x220] sm:$0xff]
    %v1071 = vld [vmem:[#allocation7 + $0x228] sm:$0xff]
    %v1072 = vld [vmem:[#allocation7 + $0x230] sm:$0xff]
    %v1073 = vld [vmem:[#allocation7 + $0x238] sm:$0xff]
    %v1074 = vld [vmem:[#allocation7 + $0x240] sm:$0xff]
    %v1075 = vld [vmem:[#allocation7 + $0x248] sm:$0xff]
    %v1076 = vld [vmem:[#allocation7 + $0x250] sm:$0xff]
    %v1077 = vld [vmem:[#allocation7 + $0x258] sm:$0xff]
    %v1078 = vld [vmem:[#allocation7 + $0x260] sm:$0xff]
    %v1079 = vld [vmem:[#allocation7 + $0x268] sm:$0xff]
    %v1080 = vld [vmem:[#allocation7 + $0x270] sm:$0xff]
    %v1081 = vld [vmem:[#allocation7 + $0x278] sm:$0xff]
    %v1082 = vld [vmem:[#allocation7 + $0x280] sm:$0xff]
    %v1083 = vld [vmem:[#allocation7 + $0x288] sm:$0xff]
    %v1084 = vld [vmem:[#allocation7 + $0x290] sm:$0xff]
    %v1085 = vld [vmem:[#allocation7 + $0x298] sm:$0xff]
    %v1086 = vld [vmem:[#allocation7 + $0x2a0] sm:$0xff]
    %v1087 = vld [vmem:[#allocation7 + $0x2a8] sm:$0xff]
    %v1088 = vld [vmem:[#allocation7 + $0x2b0] sm:$0xff]
    %v1089 = vld [vmem:[#allocation7 + $0x2b8] sm:$0xff]
    %v1090 = vld [vmem:[#allocation7 + $0x2c0] sm:$0xff]
    %v1091 = vld [vmem:[#allocation7 + $0x2c8] sm:$0xff]
    %v1092 = vld [vmem:[#allocation7 + $0x2d0] sm:$0xff]
    %v1093 = vld [vmem:[#allocation7 + $0x2d8] sm:$0xff]
    %v1094 = vld [vmem:[#allocation7 + $0x2e0] sm:$0xff]
    %v1095 = vld [vmem:[#allocation7 + $0x2e8] sm:$0xff]
    %v1096 = vld [vmem:[#allocation7 + $0x2f0] sm:$0xff]
    %v1097 = vld [vmem:[#allocation7 + $0x2f8] sm:$0xff]
    %v1098 = vld [vmem:[#allocation7 + $0x300] sm:$0xff]
    %v1099 = vld [vmem:[#allocation7 + $0x308] sm:$0xff]
    %v1100 = vld [vmem:[#allocation7 + $0x310] sm:$0xff]
    %v1101 = vld [vmem:[#allocation7 + $0x318] sm:$0xff]
    %v1102 = vld [vmem:[#allocation7 + $0x320] sm:$0xff]
    %v1103 = vld [vmem:[#allocation7 + $0x328] sm:$0xff]
    %v1104 = vld [vmem:[#allocation7 + $0x330] sm:$0xff]
    %v1105 = vld [vmem:[#allocation7 + $0x338] sm:$0xff]
    %v1106 = vld [vmem:[#allocation7 + $0x340] sm:$0xff]
    %v1107 = vld [vmem:[#allocation7 + $0x348] sm:$0xff]
    %v1108 = vld [vmem:[#allocation7 + $0x350] sm:$0xff]
    %v1109 = vld [vmem:[#allocation7 + $0x358] sm:$0xff]
    %v1110 = vld [vmem:[#allocation7 + $0x360] sm:$0xff]
    %v1111 = vld [vmem:[#allocation7 + $0x368] sm:$0xff]
    %v1112 = vld [vmem:[#allocation7 + $0x370] sm:$0xff]
    %v1113 = vld [vmem:[#allocation7 + $0x378] sm:$0xff]
    %v1114 = vld [vmem:[#allocation7 + $0x380] sm:$0xff]
    %v1115 = vld [vmem:[#allocation7 + $0x388] sm:$0xff]
    %v1116 = vld [vmem:[#allocation7 + $0x390] sm:$0xff]
    %v1117 = vld [vmem:[#allocation7 + $0x398] sm:$0xff]
    %v1118 = vld [vmem:[#allocation7 + $0x3a0] sm:$0xff]
    %v1119 = vld [vmem:[#allocation7 + $0x3a8] sm:$0xff]
    %v1120 = vld [vmem:[#allocation7 + $0x3b0] sm:$0xff]
    %v1121 = vld [vmem:[#allocation7 + $0x3b8] sm:$0xff]
    %v1122 = vld [vmem:[#allocation7 + $0x3c0] sm:$0xff]
    %v1123 = vld [vmem:[#allocation7 + $0x3c8] sm:$0xff]
    %v1124 = vld [vmem:[#allocation7 + $0x3d0] sm:$0xff]
    %v1125 = vld [vmem:[#allocation7 + $0x3d8] sm:$0xff]
    %v1126 = vld [vmem:[#allocation7 + $0x3e0] sm:$0xff]
    %v1127 = vld [vmem:[#allocation7 + $0x3e8] sm:$0xff]
    %v1128 = vld [vmem:[#allocation7 + $0x3f0] sm:$0xff]
    %v1129 = vld [vmem:[#allocation7 + $0x3f8] sm:$0xff]
    %v1130 = vlaneseq
    %v1131 = vshrl.u32 %v1130, 7
    %v1132 = vsub.s32 3, %v1131
    %v1133 = vrot.slane %v156, %v1132
    %v1134 = vlaneseq
    %v1135 = vshrl.u32 %v1134, 7
    %v1136 = vsub.s32 3, %v1135
    %v1137 = vrot.slane %v157, %v1136
    %1138 = vmatprep.subr.mxu0 %v1033
    %1139 = vmatpush1.msra.mxu0 %v1032
    %1140 = vmatprep.subr.mxu0 %v1031
    %1141 = vmatpush1.msra.mxu0 %v1030
    %1142 = vmatprep.subr.mxu0 %v1029
    %1143 = vmatpush1.msra.mxu0 %v1028
    %1144 = vmatprep.subr.mxu0 %v1027
    %1145 = vmatpush1.msra.mxu0 %v1026
    %1146 = vmatprep.subr.mxu0 %v1025
    %1147 = vmatpush1.msra.mxu0 %v1024
    %1148 = vmatprep.subr.mxu0 %v1023
    %1149 = vmatpush1.msra.mxu0 %v1022
    %1150 = vmatprep.subr.mxu0 %v1021
    %1151 = vmatpush1.msra.mxu0 %v1020
    %1152 = vmatprep.subr.mxu0 %v1019
    %1153 = vmatpush1.msra.mxu0 %v1018
    %1154 = vmatprep.subr.mxu0 %v1017
    %1155 = vmatpush1.msra.mxu0 %v1016
    %1156 = vmatprep.subr.mxu0 %v1015
    %1157 = vmatpush1.msra.mxu0 %v1014
    %1158 = vmatprep.subr.mxu0 %v1013
    %1159 = vmatpush1.msra.mxu0 %v1012
    %1160 = vmatprep.subr.mxu0 %v1011
    %1161 = vmatpush1.msra.mxu0 %v1010
    %1162 = vmatprep.subr.mxu0 %v1009
    %1163 = vmatpush1.msra.mxu0 %v1008
    %1164 = vmatprep.subr.mxu0 %v1007
    %1165 = vmatpush1.msra.mxu0 %v1006
    %1166 = vmatprep.subr.mxu0 %v1005
    %1167 = vmatpush1.msra.mxu0 %v1004
    %1168 = vmatprep.subr.mxu0 %v1003
    %1169 = vmatpush1.msra.mxu0 %v1002
    %1170 = vmatprep.subr.mxu0 %v1065
    %1171 = vmatpush2.msra.mxu0 %v1064
    %1172 = vmatprep.subr.mxu0 %v1063
    %1173 = vmatpush2.msra.mxu0 %v1062
    %1174 = vmatprep.subr.mxu0 %v1061
    %1175 = vmatpush2.msra.mxu0 %v1060
    %1176 = vmatprep.subr.mxu0 %v1059
    %1177 = vmatpush2.msra.mxu0 %v1058
    %1178 = vmatprep.subr.mxu0 %v1057
    %1179 = vmatpush2.msra.mxu0 %v1056
    %1180 = vmatprep.subr.mxu0 %v1055
    %1181 = vmatpush2.msra.mxu0 %v1054
    %1182 = vmatprep.subr.mxu0 %v1053
    %1183 = vmatpush2.msra.mxu0 %v1052
    %1184 = vmatprep.subr.mxu0 %v1051
    %1185 = vmatpush2.msra.mxu0 %v1050
    %1186 = vmatprep.subr.mxu0 %v1049
    %1187 = vmatpush2.msra.mxu0 %v1048
    %1188 = vmatprep.subr.mxu0 %v1047
    %1189 = vmatpush2.msra.mxu0 %v1046
    %1190 = vmatprep.subr.mxu0 %v1045
    %1191 = vmatpush2.msra.mxu0 %v1044
    %1192 = vmatprep.subr.mxu0 %v1043
    %1193 = vmatpush2.msra.mxu0 %v1042
    %1194 = vmatprep.subr.mxu0 %v1041
    %1195 = vmatpush2.msra.mxu0 %v1040
    %1196 = vmatprep.subr.mxu0 %v1039
    %1197 = vmatpush2.msra.mxu0 %v1038
    %1198 = vmatprep.subr.mxu0 %v1037
    %1199 = vmatpush2.msra.mxu0 %v1036
    %1200 = vmatprep.subr.mxu0 %v1035
    %1201 = vmatpush2.msra.mxu0 %v1034
    %1202 = vmatprep.mubr.f32.mxu0 %v999
    %1203 = vmatmul.mubr.f32.gmra.mxu0 %v998
    %v1204 = vpop.f32.mrf.mxu0
    %v1205 = vadd.f32 %v1133, %v1204
    %v1206 = vpop.f32.mrf.mxu0
    %v1207 = vadd.f32 %v1137, %v1206
    %1208 = vdwg.mxu0
    %1209 = vmatprep.subr.mxu0 %v1097
    %1210 = vmatpush1.msra.mxu0 %v1096
    %1211 = vmatprep.subr.mxu0 %v1095
    %1212 = vmatpush1.msra.mxu0 %v1094
    %1213 = vmatprep.subr.mxu0 %v1093
    %1214 = vmatpush1.msra.mxu0 %v1092
    %1215 = vmatprep.subr.mxu0 %v1091
    %1216 = vmatpush1.msra.mxu0 %v1090
    %1217 = vmatprep.subr.mxu0 %v1089
    %1218 = vmatpush1.msra.mxu0 %v1088
    %1219 = vmatprep.subr.mxu0 %v1087
    %1220 = vmatpush1.msra.mxu0 %v1086
    %1221 = vmatprep.subr.mxu0 %v1085
    %1222 = vmatpush1.msra.mxu0 %v1084
    %1223 = vmatprep.subr.mxu0 %v1083
    %1224 = vmatpush1.msra.mxu0 %v1082
    %1225 = vmatprep.subr.mxu0 %v1081
    %1226 = vmatpush1.msra.mxu0 %v1080
    %1227 = vmatprep.subr.mxu0 %v1079
    %1228 = vmatpush1.msra.mxu0 %v1078
    %1229 = vmatprep.subr.mxu0 %v1077
    %1230 = vmatpush1.msra.mxu0 %v1076
    %1231 = vmatprep.subr.mxu0 %v1075
    %1232 = vmatpush1.msra.mxu0 %v1074
    %1233 = vmatprep.subr.mxu0 %v1073
    %1234 = vmatpush1.msra.mxu0 %v1072
    %1235 = vmatprep.subr.mxu0 %v1071
    %1236 = vmatpush1.msra.mxu0 %v1070
    %1237 = vmatprep.subr.mxu0 %v1069
    %1238 = vmatpush1.msra.mxu0 %v1068
    %1239 = vmatprep.subr.mxu0 %v1067
    %1240 = vmatpush1.msra.mxu0 %v1066
    %1241 = vmatprep.subr.mxu0 %v1129
    %1242 = vmatpush2.msra.mxu0 %v1128
    %1243 = vmatprep.subr.mxu0 %v1127
    %1244 = vmatpush2.msra.mxu0 %v1126
    %1245 = vmatprep.subr.mxu0 %v1125
    %1246 = vmatpush2.msra.mxu0 %v1124
    %1247 = vmatprep.subr.mxu0 %v1123
    %1248 = vmatpush2.msra.mxu0 %v1122
    %1249 = vmatprep.subr.mxu0 %v1121
    %1250 = vmatpush2.msra.mxu0 %v1120
    %1251 = vmatprep.subr.mxu0 %v1119
    %1252 = vmatpush2.msra.mxu0 %v1118
    %1253 = vmatprep.subr.mxu0 %v1117
    %1254 = vmatpush2.msra.mxu0 %v1116
    %1255 = vmatprep.subr.mxu0 %v1115
    %1256 = vmatpush2.msra.mxu0 %v1114
    %1257 = vmatprep.subr.mxu0 %v1113
    %1258 = vmatpush2.msra.mxu0 %v1112
    %1259 = vmatprep.subr.mxu0 %v1111
    %1260 = vmatpush2.msra.mxu0 %v1110
    %1261 = vmatprep.subr.mxu0 %v1109
    %1262 = vmatpush2.msra.mxu0 %v1108
    %1263 = vmatprep.subr.mxu0 %v1107
    %1264 = vmatpush2.msra.mxu0 %v1106
    %1265 = vmatprep.subr.mxu0 %v1105
    %1266 = vmatpush2.msra.mxu0 %v1104
    %1267 = vmatprep.subr.mxu0 %v1103
    %1268 = vmatpush2.msra.mxu0 %v1102
    %1269 = vmatprep.subr.mxu0 %v1101
    %1270 = vmatpush2.msra.mxu0 %v1100
    %1271 = vmatprep.subr.mxu0 %v1099
    %1272 = vmatpush2.msra.mxu0 %v1098
    %1273 = vmatprep.mubr.f32.mxu0 %v1001
    %1274 = vmatmul.mubr.f32.gmra.mxu0 %v1000
    %v1275 = vpop.f32.mrf.mxu0
    %v1276 = vadd.f32 %v1205, %v1275
    %v1277 = vpop.f32.mrf.mxu0
    %v1278 = vadd.f32 %v1207, %v1277
    %1279 = vdwg.mxu0
    %v1280 = vsel %vm902, %v1276, 0.0
    %v1281 = vsel %vm902, %v1278, 0.0
    %v1282 = vadd.f32 %v1280, %v1281
    %1283 = vadd.xlane.f32.xlu0 %v1282
    %v1284 = vpop.xlane.xlu0 %1283
    %v1285 = vrcp.pop 256.0
    %v1286 = vmul.f32 %v1284, %v1285
    %v1287 = vsub.f32 %v1276, %v1286
    %v1288 = vsub.f32 %v1278, %v1286
    %v1289 = vmul.f32 %v1287, %v1287
    %v1290 = vmul.f32 %v1288, %v1288
    %v1291 = vsel %vm902, %v1289, 0.0
    %v1292 = vsel %vm902, %v1290, 0.0
    %v1293 = vadd.f32 %v1291, %v1292
    %1294 = vadd.xlane.f32.xlu0 %v1293
    %v1295 = vpop.xlane.xlu0 %1294
    %v1296 = vmul.f32 %v1295, %v1285
    %v1297 = vadd.f32 %v1296, 1e-05
    %v1298 = vrsqrt.pop %v1297
    %v1299 = vmul.f32 %v1287, %v1298
    %v1300 = vmul.f32 %v1288, %v1298
    %v1301 = vlaneseq
    %v1302 = vshrl.u32 %v1301, 7
    %v1303 = vsub.s32 4, %v1302
    %v1304 = vrot.slane %v156, %v1303
    %v1305 = vlaneseq
    %v1306 = vshrl.u32 %v1305, 7
    %v1307 = vsub.s32 4, %v1306
    %v1308 = vrot.slane %v157, %v1307
    %v1309 = vmul.f32 %v1299, %v1304
    %v1310 = vmul.f32 %v1300, %v1308
    %v1311 = vlaneseq
    %v1312 = vshrl.u32 %v1311, 7
    %v1313 = vsub.s32 5, %v1312
    %v1314 = vrot.slane %v156, %v1313
    %v1315 = vlaneseq
    %v1316 = vshrl.u32 %v1315, 7
    %v1317 = vsub.s32 5, %v1316
    %v1318 = vrot.slane %v157, %v1317
    %v1319 = vadd.f32 %v1309, %v1314
    %v1320 = vadd.f32 %v1310, %v1318
    %vm1321 = vcmp.gt.f32.partialorder %v1319, 0.0
    %vm1322 = vcmp.gt.f32.partialorder %v1320, 0.0
    %v1323 = vmin.f32 %v1319, 0.0
    %v1324 = vmin.f32 %v1320, 0.0
    %v1325 = vmul.f32 %v1323, 1.442695
    %v1326 = vpow.pop %v1325
    %v1327 = vmul.f32 %v1324, 1.442695
    %v1328 = vpow.pop %v1327
    %v1329 = vsub.f32 %v1326, 1.0
    %v1330 = vsub.f32 %v1328, 1.0
    %v1331 = vsel %vm1321, %v1319, %v1329
    %v1332 = vsel %vm1322, %v1320, %v1330
    %v1333 = vld [vmem:[%s5] sm:$0xff]
    %v1334 = vld [vmem:[%s5 + $0x8] sm:$0xff]
    %v1335 = vld [vmem:[%s5 + $0x10] sm:$0xff]
    %v1336 = vld [vmem:[%s5 + $0x18] sm:$0xff]
    %v1337 = vld [vmem:[%s5 + $0x20] sm:$0xff]
    %v1338 = vld [vmem:[%s5 + $0x28] sm:$0xff]
    %v1339 = vld [vmem:[%s5 + $0x30] sm:$0xff]
    %v1340 = vld [vmem:[%s5 + $0x38] sm:$0xff]
    %v1341 = vld [vmem:[%s5 + $0x40] sm:$0xff]
    %v1342 = vld [vmem:[%s5 + $0x48] sm:$0xff]
    %v1343 = vld [vmem:[%s5 + $0x50] sm:$0xff]
    %v1344 = vld [vmem:[%s5 + $0x58] sm:$0xff]
    %v1345 = vld [vmem:[%s5 + $0x60] sm:$0xff]
    %v1346 = vld [vmem:[%s5 + $0x68] sm:$0xff]
    %v1347 = vld [vmem:[%s5 + $0x70] sm:$0xff]
    %v1348 = vld [vmem:[%s5 + $0x78] sm:$0xff]
    %v1349 = vld [vmem:[%s5 + $0x80] sm:$0xff]
    %v1350 = vld [vmem:[%s5 + $0x88] sm:$0xff]
    %v1351 = vld [vmem:[%s5 + $0x90] sm:$0xff]
    %v1352 = vld [vmem:[%s5 + $0x98] sm:$0xff]
    %v1353 = vld [vmem:[%s5 + $0xa0] sm:$0xff]
    %v1354 = vld [vmem:[%s5 + $0xa8] sm:$0xff]
    %v1355 = vld [vmem:[%s5 + $0xb0] sm:$0xff]
    %v1356 = vld [vmem:[%s5 + $0xb8] sm:$0xff]
    %v1357 = vld [vmem:[%s5 + $0xc0] sm:$0xff]
    %v1358 = vld [vmem:[%s5 + $0xc8] sm:$0xff]
    %v1359 = vld [vmem:[%s5 + $0xd0] sm:$0xff]
    %v1360 = vld [vmem:[%s5 + $0xd8] sm:$0xff]
    %v1361 = vld [vmem:[%s5 + $0xe0] sm:$0xff]
    %v1362 = vld [vmem:[%s5 + $0xe8] sm:$0xff]
    %v1363 = vld [vmem:[%s5 + $0xf0] sm:$0xff]
    %v1364 = vld [vmem:[%s5 + $0xf8] sm:$0xff]
    %v1365 = vlaneseq
    %v1366 = vshrl.u32 %v1365, 7
    %v1367 = vsub.s32 6, %v1366
    %v1368 = vrot.slane %v156, %v1367
    %1369 = vmatprep.subr.mxu0 0.0
    %1370 = vmatpush1.msra.mxu0 %v1348
    %1371 = vmatprep.subr.mxu0 0.0
    %1372 = vmatpush1.msra.mxu0 %v1347
    %1373 = vmatprep.subr.mxu0 0.0
    %1374 = vmatpush1.msra.mxu0 %v1346
    %1375 = vmatprep.subr.mxu0 0.0
    %1376 = vmatpush1.msra.mxu0 %v1345
    %1377 = vmatprep.subr.mxu0 0.0
    %1378 = vmatpush1.msra.mxu0 %v1344
    %1379 = vmatprep.subr.mxu0 0.0
    %1380 = vmatpush1.msra.mxu0 %v1343
    %1381 = vmatprep.subr.mxu0 0.0
    %1382 = vmatpush1.msra.mxu0 %v1342
    %1383 = vmatprep.subr.mxu0 0.0
    %1384 = vmatpush1.msra.mxu0 %v1341
    %1385 = vmatprep.subr.mxu0 0.0
    %1386 = vmatpush1.msra.mxu0 %v1340
    %1387 = vmatprep.subr.mxu0 0.0
    %1388 = vmatpush1.msra.mxu0 %v1339
    %1389 = vmatprep.subr.mxu0 0.0
    %1390 = vmatpush1.msra.mxu0 %v1338
    %1391 = vmatprep.subr.mxu0 0.0
    %1392 = vmatpush1.msra.mxu0 %v1337
    %1393 = vmatprep.subr.mxu0 0.0
    %1394 = vmatpush1.msra.mxu0 %v1336
    %1395 = vmatprep.subr.mxu0 0.0
    %1396 = vmatpush1.msra.mxu0 %v1335
    %1397 = vmatprep.subr.mxu0 0.0
    %1398 = vmatpush1.msra.mxu0 %v1334
    %1399 = vmatprep.subr.mxu0 0.0
    %1400 = vmatpush1.msra.mxu0 %v1333
    %1401 = vmatprep.subr.mxu0 0.0
    %1402 = vmatpush2.msra.mxu0 %v1364
    %1403 = vmatprep.subr.mxu0 0.0
    %1404 = vmatpush2.msra.mxu0 %v1363
    %1405 = vmatprep.subr.mxu0 0.0
    %1406 = vmatpush2.msra.mxu0 %v1362
    %1407 = vmatprep.subr.mxu0 0.0
    %1408 = vmatpush2.msra.mxu0 %v1361
    %1409 = vmatprep.subr.mxu0 0.0
    %1410 = vmatpush2.msra.mxu0 %v1360
    %1411 = vmatprep.subr.mxu0 0.0
    %1412 = vmatpush2.msra.mxu0 %v1359
    %1413 = vmatprep.subr.mxu0 0.0
    %1414 = vmatpush2.msra.mxu0 %v1358
    %1415 = vmatprep.subr.mxu0 0.0
    %1416 = vmatpush2.msra.mxu0 %v1357
    %1417 = vmatprep.subr.mxu0 0.0
    %1418 = vmatpush2.msra.mxu0 %v1356
    %1419 = vmatprep.subr.mxu0 0.0
    %1420 = vmatpush2.msra.mxu0 %v1355
    %1421 = vmatprep.subr.mxu0 0.0
    %1422 = vmatpush2.msra.mxu0 %v1354
    %1423 = vmatprep.subr.mxu0 0.0
    %1424 = vmatpush2.msra.mxu0 %v1353
    %1425 = vmatprep.subr.mxu0 0.0
    %1426 = vmatpush2.msra.mxu0 %v1352
    %1427 = vmatprep.subr.mxu0 0.0
    %1428 = vmatpush2.msra.mxu0 %v1351
    %1429 = vmatprep.subr.mxu0 0.0
    %1430 = vmatpush2.msra.mxu0 %v1350
    %1431 = vmatprep.subr.mxu0 0.0
    %1432 = vmatpush2.msra.mxu0 %v1349
    %1433 = vmatprep.mubr.f32.mxu0 %v1332
    %1434 = vmatmul.mubr.f32.gmra.mxu0 %v1331
    %v1435 = vpop.f32.mrf.mxu0
    %v1436 = vadd.f32 %v1368, %v1435
    %v1437 = vpop.f32.mrf.mxu0
    %1438 = vdwg.mxu0
    %v1439 = vsel %vm902, %v1436, 0.0
    %1440 = vadd.xlane.f32.xlu0 %v1439
    %v1441 = vpop.xlane.xlu0 %1440
    %v1442 = vrcp.pop 128.0
    %v1443 = vmul.f32 %v1441, %v1442
    %v1444 = vsub.f32 %v1436, %v1443
    %v1445 = vmul.f32 %v1444, %v1444
    %v1446 = vsel %vm902, %v1445, 0.0
    %1447 = vadd.xlane.f32.xlu0 %v1446
    %v1448 = vpop.xlane.xlu0 %1447
    %v1449 = vmul.f32 %v1448, %v1442
    %v1450 = vadd.f32 %v1449, 1e-05
    %v1451 = vrsqrt.pop %v1450
    %v1452 = vmul.f32 %v1444, %v1451
    %v1453 = vlaneseq
    %v1454 = vshrl.u32 %v1453, 7
    %v1455 = vsub.s32 7, %v1454
    %v1456 = vrot.slane %v156, %v1455
    %v1457 = vmul.f32 %v1452, %v1456
    %v1458 = vlaneseq
    %v1459 = vshrl.u32 %v1458, 7
    %v1460 = vsub.s32 0, %v1459
    %v1461 = vrot.slane %v160, %v1460
    %v1462 = vadd.f32 %v1457, %v1461
    %vm1463 = vcmp.gt.f32.partialorder %v1462, 0.0
    %v1464 = vmin.f32 %v1462, 0.0
    %v1465 = vmul.f32 %v1464, 1.442695
    %v1466 = vpow.pop %v1465
    %v1467 = vsub.f32 %v1466, 1.0
    %v1468 = vsel %vm1463, %v1462, %v1467
    %v1469 = vld [vmem:[%s6] sm:$0xff]
    %v1470 = vld [vmem:[%s6 + $0x8] sm:$0xff]
    %v1471 = vld [vmem:[%s6 + $0x10] sm:$0xff]
    %v1472 = vld [vmem:[%s6 + $0x18] sm:$0xff]
    %v1473 = vld [vmem:[%s6 + $0x20] sm:$0xff]
    %v1474 = vld [vmem:[%s6 + $0x28] sm:$0xff]
    %v1475 = vld [vmem:[%s6 + $0x30] sm:$0xff]
    %v1476 = vld [vmem:[%s6 + $0x38] sm:$0xff]
    %v1477 = vld [vmem:[%s6 + $0x40] sm:$0xff]
    %v1478 = vld [vmem:[%s6 + $0x48] sm:$0xff]
    %v1479 = vld [vmem:[%s6 + $0x50] sm:$0xff]
    %v1480 = vld [vmem:[%s6 + $0x58] sm:$0xff]
    %v1481 = vld [vmem:[%s6 + $0x60] sm:$0xff]
    %v1482 = vld [vmem:[%s6 + $0x68] sm:$0xff]
    %v1483 = vld [vmem:[%s6 + $0x70] sm:$0xff]
    %v1484 = vld [vmem:[%s6 + $0x78] sm:$0xff]
    %v1485 = vlaneseq
    %v1486 = vshrl.u32 %v1485, 7
    %v1487 = vsub.s32 1, %v1486
    %v1488 = vrot.slane %v160, %v1487
    %1489 = vmatprep.subr.mxu0 0.0
    %1490 = vmatpush1.msra.mxu0 %v1484
    %1491 = vmatprep.subr.mxu0 0.0
    %1492 = vmatpush1.msra.mxu0 %v1483
    %1493 = vmatprep.subr.mxu0 0.0
    %1494 = vmatpush1.msra.mxu0 %v1482
    %1495 = vmatprep.subr.mxu0 0.0
    %1496 = vmatpush1.msra.mxu0 %v1481
    %1497 = vmatprep.subr.mxu0 0.0
    %1498 = vmatpush1.msra.mxu0 %v1480
    %1499 = vmatprep.subr.mxu0 0.0
    %1500 = vmatpush1.msra.mxu0 %v1479
    %1501 = vmatprep.subr.mxu0 0.0
    %1502 = vmatpush1.msra.mxu0 %v1478
    %1503 = vmatprep.subr.mxu0 0.0
    %1504 = vmatpush1.msra.mxu0 %v1477
    %1505 = vmatprep.subr.mxu0 0.0
    %1506 = vmatpush1.msra.mxu0 %v1476
    %1507 = vmatprep.subr.mxu0 0.0
    %1508 = vmatpush1.msra.mxu0 %v1475
    %1509 = vmatprep.subr.mxu0 0.0
    %1510 = vmatpush1.msra.mxu0 %v1474
    %1511 = vmatprep.subr.mxu0 0.0
    %1512 = vmatpush1.msra.mxu0 %v1473
    %1513 = vmatprep.subr.mxu0 0.0
    %1514 = vmatpush1.msra.mxu0 %v1472
    %1515 = vmatprep.subr.mxu0 0.0
    %1516 = vmatpush1.msra.mxu0 %v1471
    %1517 = vmatprep.subr.mxu0 0.0
    %1518 = vmatpush1.msra.mxu0 %v1470
    %1519 = vmatprep.subr.mxu0 0.0
    %1520 = vmatpush1.msra.mxu0 %v1469
    %1521 = vmatprep.subr.mxu0 0.0
    %1522 = vmatpush2.msra.mxu0 0.0
    %1523 = vmatprep.subr.mxu0 0.0
    %1524 = vmatpush2.msra.mxu0 0.0
    %1525 = vmatprep.subr.mxu0 0.0
    %1526 = vmatpush2.msra.mxu0 0.0
    %1527 = vmatprep.subr.mxu0 0.0
    %1528 = vmatpush2.msra.mxu0 0.0
    %1529 = vmatprep.subr.mxu0 0.0
    %1530 = vmatpush2.msra.mxu0 0.0
    %1531 = vmatprep.subr.mxu0 0.0
    %1532 = vmatpush2.msra.mxu0 0.0
    %1533 = vmatprep.subr.mxu0 0.0
    %1534 = vmatpush2.msra.mxu0 0.0
    %1535 = vmatprep.subr.mxu0 0.0
    %1536 = vmatpush2.msra.mxu0 0.0
    %1537 = vmatprep.subr.mxu0 0.0
    %1538 = vmatpush2.msra.mxu0 0.0
    %1539 = vmatprep.subr.mxu0 0.0
    %1540 = vmatpush2.msra.mxu0 0.0
    %1541 = vmatprep.subr.mxu0 0.0
    %1542 = vmatpush2.msra.mxu0 0.0
    %1543 = vmatprep.subr.mxu0 0.0
    %1544 = vmatpush2.msra.mxu0 0.0
    %1545 = vmatprep.subr.mxu0 0.0
    %1546 = vmatpush2.msra.mxu0 0.0
    %1547 = vmatprep.subr.mxu0 0.0
    %1548 = vmatpush2.msra.mxu0 0.0
    %1549 = vmatprep.subr.mxu0 0.0
    %1550 = vmatpush2.msra.mxu0 0.0
    %1551 = vmatprep.subr.mxu0 0.0
    %1552 = vmatpush2.msra.mxu0 0.0
    %1553 = vmatprep.mubr.f32.mxu0 0.0
    %1554 = vmatmul.mubr.f32.gmra.mxu0 %v1468
    %v1555 = vpop.f32.mrf.mxu0
    %v1556 = vadd.f32 %v1488, %v1555
    %v1557 = vpop.f32.mrf.mxu0
    %1558 = vdwg.mxu0
    %v1559 = vld [vmem:[#allocation8] sm:$0xff]
    %v1560 = vld [vmem:[#allocation8 + $0x8] sm:$0xff]
    %v1561 = vld [vmem:[#allocation8 + $0x10] sm:$0xff]
    %v1562 = vld [vmem:[#allocation8 + $0x18] sm:$0xff]
    %v1563 = vld [vmem:[#allocation8 + $0x20] sm:$0xff]
    %v1564 = vld [vmem:[#allocation8 + $0x28] sm:$0xff]
    %v1565 = vld [vmem:[#allocation8 + $0x30] sm:$0xff]
    %v1566 = vld [vmem:[#allocation8 + $0x38] sm:$0xff]
    %v1567 = vld [vmem:[#allocation8 + $0x40] sm:$0x7f]
    %v1568 = vld [vmem:[#allocation8 + $0x48] sm:$0x7f]
    %v1569 = vld [vmem:[#allocation8 + $0x50] sm:$0x7f]
    %v1570 = vld [vmem:[#allocation8 + $0x58] sm:$0x7f]
    %v1571 = vld [vmem:[#allocation10] sm:$0xff]
    %v1572 = vld [vmem:[#allocation10 + $0x8] sm:$0xff]
    %v1573 = vld [vmem:[#allocation10 + $0x10] sm:$0xff]
    %v1574 = vld [vmem:[#allocation10 + $0x18] sm:$0xff]
    %v1575 = vld [vmem:[#allocation10 + $0x20] sm:$0xff]
    %v1576 = vld [vmem:[#allocation10 + $0x28] sm:$0xff]
    %v1577 = vld [vmem:[#allocation10 + $0x30] sm:$0xff]
    %v1578 = vld [vmem:[#allocation10 + $0x38] sm:$0xff]
    %v1579 = vld [vmem:[#allocation10 + $0x40] sm:$0xff]
    %v1580 = vld [vmem:[#allocation10 + $0x48] sm:$0xff]
    %v1581 = vld [vmem:[#allocation10 + $0x50] sm:$0xff]
    %v1582 = vld [vmem:[#allocation10 + $0x58] sm:$0xff]
    %v1583 = vld [vmem:[#allocation10 + $0x60] sm:$0xff]
    %v1584 = vld [vmem:[#allocation10 + $0x68] sm:$0xff]
    %v1585 = vld [vmem:[#allocation10 + $0x70] sm:$0xff]
    %v1586 = vld [vmem:[#allocation10 + $0x78] sm:$0xff]
    %v1587 = vld [vmem:[#allocation10 + $0x80] sm:$0xff]
    %v1588 = vld [vmem:[#allocation10 + $0x88] sm:$0xff]
    %v1589 = vld [vmem:[#allocation10 + $0x90] sm:$0xff]
    %v1590 = vld [vmem:[#allocation10 + $0x98] sm:$0xff]
    %v1591 = vld [vmem:[#allocation10 + $0xa0] sm:$0xff]
    %v1592 = vld [vmem:[#allocation10 + $0xa8] sm:$0xff]
    %v1593 = vld [vmem:[#allocation10 + $0xb0] sm:$0xff]
    %v1594 = vld [vmem:[#allocation10 + $0xb8] sm:$0xff]
    %1595 = vmatprep.subr.mxu0 0.0
    %1596 = vmatpush1.msra.mxu0 0.0
    %1597 = vmatprep.subr.mxu0 0.0
    %1598 = vmatpush1.msra.mxu0 0.0
    %1599 = vmatprep.subr.mxu0 0.0
    %1600 = vmatpush1.msra.mxu0 0.0
    %1601 = vmatprep.subr.mxu0 0.0
    %1602 = vmatpush1.msra.mxu0 0.0
    %1603 = vmatprep.subr.mxu0 0.0
    %1604 = vmatpush1.msra.mxu0 0.0
    %1605 = vmatprep.subr.mxu0 0.0
    %1606 = vmatpush1.msra.mxu0 0.0
    %1607 = vmatprep.subr.mxu0 0.0
    %1608 = vmatpush1.msra.mxu0 0.0
    %1609 = vmatprep.subr.mxu0 0.0
    %1610 = vmatpush1.msra.mxu0 0.0
    %1611 = vmatprep.subr.mxu0 0.0
    %1612 = vmatpush1.msra.mxu0 0.0
    %1613 = vmatprep.subr.mxu0 0.0
    %1614 = vmatpush1.msra.mxu0 0.0
    %1615 = vmatprep.subr.mxu0 %v1592
    %1616 = vmatpush1.msra.mxu0 %v1591
    %1617 = vmatprep.subr.mxu0 %v1588
    %1618 = vmatpush1.msra.mxu0 %v1587
    %1619 = vmatprep.subr.mxu0 %v1584
    %1620 = vmatpush1.msra.mxu0 %v1583
    %1621 = vmatprep.subr.mxu0 %v1580
    %1622 = vmatpush1.msra.mxu0 %v1579
    %1623 = vmatprep.subr.mxu0 %v1576
    %1624 = vmatpush1.msra.mxu0 %v1575
    %1625 = vmatprep.subr.mxu0 %v1572
    %1626 = vmatpush1.msra.mxu0 %v1571
    %1627 = vmatprep.subr.mxu0 0.0
    %1628 = vmatpush2.msra.mxu0 0.0
    %1629 = vmatprep.subr.mxu0 0.0
    %1630 = vmatpush2.msra.mxu0 0.0
    %1631 = vmatprep.subr.mxu0 0.0
    %1632 = vmatpush2.msra.mxu0 0.0
    %1633 = vmatprep.subr.mxu0 0.0
    %1634 = vmatpush2.msra.mxu0 0.0
    %1635 = vmatprep.subr.mxu0 0.0
    %1636 = vmatpush2.msra.mxu0 0.0
    %1637 = vmatprep.subr.mxu0 0.0
    %1638 = vmatpush2.msra.mxu0 0.0
    %1639 = vmatprep.subr.mxu0 0.0
    %1640 = vmatpush2.msra.mxu0 0.0
    %1641 = vmatprep.subr.mxu0 0.0
    %1642 = vmatpush2.msra.mxu0 0.0
    %1643 = vmatprep.subr.mxu0 0.0
    %1644 = vmatpush2.msra.mxu0 0.0
    %1645 = vmatprep.subr.mxu0 0.0
    %1646 = vmatpush2.msra.mxu0 0.0
    %1647 = vmatprep.subr.mxu0 0.0
    %1648 = vmatpush2.msra.mxu0 0.0
    %1649 = vmatprep.subr.mxu0 0.0
    %1650 = vmatpush2.msra.mxu0 0.0
    %1651 = vmatprep.subr.mxu0 0.0
    %1652 = vmatpush2.msra.mxu0 0.0
    %1653 = vmatprep.subr.mxu0 0.0
    %1654 = vmatpush2.msra.mxu0 0.0
    %1655 = vmatprep.subr.mxu0 0.0
    %1656 = vmatpush2.msra.mxu0 0.0
    %1657 = vmatprep.subr.mxu0 0.0
    %1658 = vmatpush2.msra.mxu0 0.0
    %1659 = vmatprep.mubr.f32.mxu0 0.0
    %1660 = vmatmul.mubr.f32.gmra.mxu0 %v430
    %v1661 = vpop.f32.mrf.mxu0
    %v1662 = vadd.f32 0.0, %v1661
    %v1663 = vpop.f32.mrf.mxu0
    %v1664 = vadd.f32 0.0, %v1663
    %1665 = vdwg.mxu0
    %1666 = vmatprep.subr.mxu0 0.0
    %1667 = vmatpush1.msra.mxu0 0.0
    %1668 = vmatprep.subr.mxu0 0.0
    %1669 = vmatpush1.msra.mxu0 0.0
    %1670 = vmatprep.subr.mxu0 0.0
    %1671 = vmatpush1.msra.mxu0 0.0
    %1672 = vmatprep.subr.mxu0 0.0
    %1673 = vmatpush1.msra.mxu0 0.0
    %1674 = vmatprep.subr.mxu0 0.0
    %1675 = vmatpush1.msra.mxu0 0.0
    %1676 = vmatprep.subr.mxu0 0.0
    %1677 = vmatpush1.msra.mxu0 0.0
    %1678 = vmatprep.subr.mxu0 0.0
    %1679 = vmatpush1.msra.mxu0 0.0
    %1680 = vmatprep.subr.mxu0 0.0
    %1681 = vmatpush1.msra.mxu0 0.0
    %1682 = vmatprep.subr.mxu0 0.0
    %1683 = vmatpush1.msra.mxu0 0.0
    %1684 = vmatprep.subr.mxu0 0.0
    %1685 = vmatpush1.msra.mxu0 0.0
    %1686 = vmatprep.subr.mxu0 %v1594
    %1687 = vmatpush1.msra.mxu0 %v1593
    %1688 = vmatprep.subr.mxu0 %v1590
    %1689 = vmatpush1.msra.mxu0 %v1589
    %1690 = vmatprep.subr.mxu0 %v1586
    %1691 = vmatpush1.msra.mxu0 %v1585
    %1692 = vmatprep.subr.mxu0 %v1582
    %1693 = vmatpush1.msra.mxu0 %v1581
    %1694 = vmatprep.subr.mxu0 %v1578
    %1695 = vmatpush1.msra.mxu0 %v1577
    %1696 = vmatprep.subr.mxu0 %v1574
    %1697 = vmatpush1.msra.mxu0 %v1573
    %1698 = vmatprep.subr.mxu0 0.0
    %1699 = vmatpush2.msra.mxu0 0.0
    %1700 = vmatprep.subr.mxu0 0.0
    %1701 = vmatpush2.msra.mxu0 0.0
    %1702 = vmatprep.subr.mxu0 0.0
    %1703 = vmatpush2.msra.mxu0 0.0
    %1704 = vmatprep.subr.mxu0 0.0
    %1705 = vmatpush2.msra.mxu0 0.0
    %1706 = vmatprep.subr.mxu0 0.0
    %1707 = vmatpush2.msra.mxu0 0.0
    %1708 = vmatprep.subr.mxu0 0.0
    %1709 = vmatpush2.msra.mxu0 0.0
    %1710 = vmatprep.subr.mxu0 0.0
    %1711 = vmatpush2.msra.mxu0 0.0
    %1712 = vmatprep.subr.mxu0 0.0
    %1713 = vmatpush2.msra.mxu0 0.0
    %1714 = vmatprep.subr.mxu0 0.0
    %1715 = vmatpush2.msra.mxu0 0.0
    %1716 = vmatprep.subr.mxu0 0.0
    %1717 = vmatpush2.msra.mxu0 0.0
    %1718 = vmatprep.subr.mxu0 0.0
    %1719 = vmatpush2.msra.mxu0 0.0
    %1720 = vmatprep.subr.mxu0 0.0
    %1721 = vmatpush2.msra.mxu0 0.0
    %1722 = vmatprep.subr.mxu0 0.0
    %1723 = vmatpush2.msra.mxu0 0.0
    %1724 = vmatprep.subr.mxu0 0.0
    %1725 = vmatpush2.msra.mxu0 0.0
    %1726 = vmatprep.subr.mxu0 0.0
    %1727 = vmatpush2.msra.mxu0 0.0
    %1728 = vmatprep.subr.mxu0 0.0
    %1729 = vmatpush2.msra.mxu0 0.0
    %1730 = vmatprep.mubr.f32.mxu0 0.0
    %1731 = vmatmul.mubr.f32.gmra.mxu0 %v430
    %v1732 = vpop.f32.mrf.mxu0
    %v1733 = vadd.f32 0.0, %v1732
    %v1734 = vpop.f32.mrf.mxu0
    %v1735 = vadd.f32 0.0, %v1734
    %1736 = vdwg.mxu0
    %vm1737 = vcmask 187392
    %v1739 = vsel %vm1737, %v1556, 0
    %vm1741 = vcmask 1046528
    %v1743 = vsel %vm1741, %v1567, 0
    %v1746 = vsel %vm1741, %v1568, 0
    %v1749 = vsel %vm1741, %v1569, 0
    %v1752 = vsel %vm1741, %v1570, 0
    %1754 = vmatprep.subr.mxu0 0.0
    %1755 = vmatpush1.msra.mxu0 0.0
    %1756 = vmatprep.subr.mxu0 0.0
    %1757 = vmatpush1.msra.mxu0 0.0
    %1758 = vmatprep.subr.mxu0 0.0
    %1759 = vmatpush1.msra.mxu0 0.0
    %1760 = vmatprep.subr.mxu0 0.0
    %1761 = vmatpush1.msra.mxu0 0.0
    %1762 = vmatprep.subr.mxu0 0.0
    %1763 = vmatpush1.msra.mxu0 0.0
    %1764 = vmatprep.subr.mxu0 0.0
    %1765 = vmatpush1.msra.mxu0 0.0
    %1766 = vmatprep.subr.mxu0 0.0
    %1767 = vmatpush1.msra.mxu0 0.0
    %1768 = vmatprep.subr.mxu0 0.0
    %1769 = vmatpush1.msra.mxu0 0.0
    %1770 = vmatprep.subr.mxu0 0.0
    %1771 = vmatpush1.msra.mxu0 0.0
    %1772 = vmatprep.subr.mxu0 0.0
    %1773 = vmatpush1.msra.mxu0 0.0
    %1774 = vmatprep.subr.mxu0 0.0
    %1775 = vmatpush1.msra.mxu0 0.0
    %1776 = vmatprep.subr.mxu0 0.0
    %1777 = vmatpush1.msra.mxu0 0.0
    %1778 = vmatprep.subr.mxu0 0.0
    %1779 = vmatpush1.msra.mxu0 0.0
    %1780 = vmatprep.subr.mxu0 %v1746
    %1781 = vmatpush1.msra.mxu0 %v1743
    %1782 = vmatprep.subr.mxu0 %v1564
    %1783 = vmatpush1.msra.mxu0 %v1563
    %1784 = vmatprep.subr.mxu0 %v1560
    %1785 = vmatpush1.msra.mxu0 %v1559
    %1786 = vmatprep.subr.mxu0 0.0
    %1787 = vmatpush2.msra.mxu0 0.0
    %1788 = vmatprep.subr.mxu0 0.0
    %1789 = vmatpush2.msra.mxu0 0.0
    %1790 = vmatprep.subr.mxu0 0.0
    %1791 = vmatpush2.msra.mxu0 0.0
    %1792 = vmatprep.subr.mxu0 0.0
    %1793 = vmatpush2.msra.mxu0 0.0
    %1794 = vmatprep.subr.mxu0 0.0
    %1795 = vmatpush2.msra.mxu0 0.0
    %1796 = vmatprep.subr.mxu0 0.0
    %1797 = vmatpush2.msra.mxu0 0.0
    %1798 = vmatprep.subr.mxu0 0.0
    %1799 = vmatpush2.msra.mxu0 0.0
    %1800 = vmatprep.subr.mxu0 0.0
    %1801 = vmatpush2.msra.mxu0 0.0
    %1802 = vmatprep.subr.mxu0 0.0
    %1803 = vmatpush2.msra.mxu0 0.0
    %1804 = vmatprep.subr.mxu0 0.0
    %1805 = vmatpush2.msra.mxu0 0.0
    %1806 = vmatprep.subr.mxu0 0.0
    %1807 = vmatpush2.msra.mxu0 0.0
    %1808 = vmatprep.subr.mxu0 0.0
    %1809 = vmatpush2.msra.mxu0 0.0
    %1810 = vmatprep.subr.mxu0 0.0
    %1811 = vmatpush2.msra.mxu0 0.0
    %1812 = vmatprep.subr.mxu0 0.0
    %1813 = vmatpush2.msra.mxu0 0.0
    %1814 = vmatprep.subr.mxu0 0.0
    %1815 = vmatpush2.msra.mxu0 0.0
    %1816 = vmatprep.subr.mxu0 0.0
    %1817 = vmatpush2.msra.mxu0 0.0
    %1818 = vmatprep.mubr.f32.mxu0 0.0
    %1819 = vmatmul.mubr.f32.gmra.mxu0 %v1739
    %v1820 = vpop.f32.mrf.mxu0
    %v1821 = vadd.f32 %v1662, %v1820
    %v1822 = vpop.f32.mrf.mxu0
    %v1823 = vadd.f32 %v1664, %v1822
    %1824 = vdwg.mxu0
    %1825 = vmatprep.subr.mxu0 0.0
    %1826 = vmatpush1.msra.mxu0 0.0
    %1827 = vmatprep.subr.mxu0 0.0
    %1828 = vmatpush1.msra.mxu0 0.0
    %1829 = vmatprep.subr.mxu0 0.0
    %1830 = vmatpush1.msra.mxu0 0.0
    %1831 = vmatprep.subr.mxu0 0.0
    %1832 = vmatpush1.msra.mxu0 0.0
    %1833 = vmatprep.subr.mxu0 0.0
    %1834 = vmatpush1.msra.mxu0 0.0
    %1835 = vmatprep.subr.mxu0 0.0
    %1836 = vmatpush1.msra.mxu0 0.0
    %1837 = vmatprep.subr.mxu0 0.0
    %1838 = vmatpush1.msra.mxu0 0.0
    %1839 = vmatprep.subr.mxu0 0.0
    %1840 = vmatpush1.msra.mxu0 0.0
    %1841 = vmatprep.subr.mxu0 0.0
    %1842 = vmatpush1.msra.mxu0 0.0
    %1843 = vmatprep.subr.mxu0 0.0
    %1844 = vmatpush1.msra.mxu0 0.0
    %1845 = vmatprep.subr.mxu0 0.0
    %1846 = vmatpush1.msra.mxu0 0.0
    %1847 = vmatprep.subr.mxu0 0.0
    %1848 = vmatpush1.msra.mxu0 0.0
    %1849 = vmatprep.subr.mxu0 0.0
    %1850 = vmatpush1.msra.mxu0 0.0
    %1851 = vmatprep.subr.mxu0 %v1752
    %1852 = vmatpush1.msra.mxu0 %v1749
    %1853 = vmatprep.subr.mxu0 %v1566
    %1854 = vmatpush1.msra.mxu0 %v1565
    %1855 = vmatprep.subr.mxu0 %v1562
    %1856 = vmatpush1.msra.mxu0 %v1561
    %1857 = vmatprep.subr.mxu0 0.0
    %1858 = vmatpush2.msra.mxu0 0.0
    %1859 = vmatprep.subr.mxu0 0.0
    %1860 = vmatpush2.msra.mxu0 0.0
    %1861 = vmatprep.subr.mxu0 0.0
    %1862 = vmatpush2.msra.mxu0 0.0
    %1863 = vmatprep.subr.mxu0 0.0
    %1864 = vmatpush2.msra.mxu0 0.0
    %1865 = vmatprep.subr.mxu0 0.0
    %1866 = vmatpush2.msra.mxu0 0.0
    %1867 = vmatprep.subr.mxu0 0.0
    %1868 = vmatpush2.msra.mxu0 0.0
    %1869 = vmatprep.subr.mxu0 0.0
    %1870 = vmatpush2.msra.mxu0 0.0
    %1871 = vmatprep.subr.mxu0 0.0
    %1872 = vmatpush2.msra.mxu0 0.0
    %1873 = vmatprep.subr.mxu0 0.0
    %1874 = vmatpush2.msra.mxu0 0.0
    %1875 = vmatprep.subr.mxu0 0.0
    %1876 = vmatpush2.msra.mxu0 0.0
    %1877 = vmatprep.subr.mxu0 0.0
    %1878 = vmatpush2.msra.mxu0 0.0
    %1879 = vmatprep.subr.mxu0 0.0
    %1880 = vmatpush2.msra.mxu0 0.0
    %1881 = vmatprep.subr.mxu0 0.0
    %1882 = vmatpush2.msra.mxu0 0.0
    %1883 = vmatprep.subr.mxu0 0.0
    %1884 = vmatpush2.msra.mxu0 0.0
    %1885 = vmatprep.subr.mxu0 0.0
    %1886 = vmatpush2.msra.mxu0 0.0
    %1887 = vmatprep.subr.mxu0 0.0
    %1888 = vmatpush2.msra.mxu0 0.0
    %1889 = vmatprep.mubr.f32.mxu0 0.0
    %1890 = vmatmul.mubr.f32.gmra.mxu0 %v1739
    %v1891 = vpop.f32.mrf.mxu0
    %v1892 = vadd.f32 %v1733, %v1891
    %v1893 = vpop.f32.mrf.mxu0
    %v1894 = vadd.f32 %v1735, %v1893
    %1895 = vdwg.mxu0
    %v1896 = vlaneseq
    %v1897 = vshrl.u32 %v1896, 7
    %v1898 = vsub.s32 2, %v1897
    %v1899 = vrot.slane %v160, %v1898
    %v1900 = vlaneseq
    %v1901 = vshrl.u32 %v1900, 7
    %v1902 = vsub.s32 2, %v1901
    %v1903 = vrot.slane %v161, %v1902
    %v1904 = vlaneseq
    %v1905 = vshrl.u32 %v1904, 7
    %v1906 = vsub.s32 2, %v1905
    %v1907 = vrot.slane %v162, %v1906
    %v1908 = vlaneseq
    %v1909 = vshrl.u32 %v1908, 7
    %v1910 = vsub.s32 2, %v1909
    %v1911 = vrot.slane %v163, %v1910
    %v1912 = vadd.f32 %v1821, %v1899
    %v1913 = vadd.f32 %v1823, %v1903
    %v1914 = vadd.f32 %v1892, %v1907
    %v1915 = vadd.f32 %v1894, %v1911
    %vm1916 = vcmp.gt.f32.partialorder %v1912, 0.0
    %vm1917 = vcmp.gt.f32.partialorder %v1913, 0.0
    %vm1918 = vcmp.gt.f32.partialorder %v1914, 0.0
    %vm1919 = vcmp.gt.f32.partialorder %v1915, 0.0
    %v1920 = vmin.f32 %v1912, 0.0
    %v1921 = vmin.f32 %v1913, 0.0
    %v1922 = vmin.f32 %v1914, 0.0
    %v1923 = vmin.f32 %v1915, 0.0
    %v1924 = vmul.f32 %v1920, 1.442695
    %v1925 = vpow.pop %v1924
    %v1926 = vmul.f32 %v1921, 1.442695
    %v1927 = vpow.pop %v1926
    %v1928 = vmul.f32 %v1922, 1.442695
    %v1929 = vpow.pop %v1928
    %v1930 = vmul.f32 %v1923, 1.442695
    %v1931 = vpow.pop %v1930
    %v1932 = vsub.f32 %v1925, 1.0
    %v1933 = vsub.f32 %v1927, 1.0
    %v1934 = vsub.f32 %v1929, 1.0
    %v1935 = vsub.f32 %v1931, 1.0
    %v1936 = vsel %vm1916, %v1912, %v1932
    %v1937 = vsel %vm1917, %v1913, %v1933
    %v1938 = vsel %vm1918, %v1914, %v1934
    %v1939 = vsel %vm1919, %v1915, %v1935
    %v1940 = vld [vmem:[#allocation11] sm:$0xff]
    %v1941 = vld [vmem:[#allocation11 + $0x8] sm:$0xff]
    %v1942 = vld [vmem:[#allocation11 + $0x10] sm:$0xff]
    %v1943 = vld [vmem:[#allocation11 + $0x18] sm:$0xff]
    %v1944 = vld [vmem:[#allocation11 + $0x20] sm:$0xff]
    %v1945 = vld [vmem:[#allocation11 + $0x28] sm:$0xff]
    %v1946 = vld [vmem:[#allocation11 + $0x30] sm:$0xff]
    %v1947 = vld [vmem:[#allocation11 + $0x38] sm:$0xff]
    %v1948 = vld [vmem:[#allocation11 + $0x40] sm:$0xff]
    %v1949 = vld [vmem:[#allocation11 + $0x48] sm:$0xff]
    %v1950 = vld [vmem:[#allocation11 + $0x50] sm:$0xff]
    %v1951 = vld [vmem:[#allocation11 + $0x58] sm:$0xff]
    %v1952 = vld [vmem:[#allocation11 + $0x60] sm:$0xff]
    %v1953 = vld [vmem:[#allocation11 + $0x68] sm:$0xff]
    %v1954 = vld [vmem:[#allocation11 + $0x70] sm:$0xff]
    %v1955 = vld [vmem:[#allocation11 + $0x78] sm:$0xff]
    %v1956 = vld [vmem:[#allocation11 + $0x80] sm:$0xff]
    %v1957 = vld [vmem:[#allocation11 + $0x88] sm:$0xff]
    %v1958 = vld [vmem:[#allocation11 + $0x90] sm:$0xff]
    %v1959 = vld [vmem:[#allocation11 + $0x98] sm:$0xff]
    %v1960 = vld [vmem:[#allocation11 + $0xa0] sm:$0xff]
    %v1961 = vld [vmem:[#allocation11 + $0xa8] sm:$0xff]
    %v1962 = vld [vmem:[#allocation11 + $0xb0] sm:$0xff]
    %v1963 = vld [vmem:[#allocation11 + $0xb8] sm:$0xff]
    %v1964 = vld [vmem:[#allocation11 + $0xc0] sm:$0xff]
    %v1965 = vld [vmem:[#allocation11 + $0xc8] sm:$0xff]
    %v1966 = vld [vmem:[#allocation11 + $0xd0] sm:$0xff]
    %v1967 = vld [vmem:[#allocation11 + $0xd8] sm:$0xff]
    %v1968 = vld [vmem:[#allocation11 + $0xe0] sm:$0xff]
    %v1969 = vld [vmem:[#allocation11 + $0xe8] sm:$0xff]
    %v1970 = vld [vmem:[#allocation11 + $0xf0] sm:$0xff]
    %v1971 = vld [vmem:[#allocation11 + $0xf8] sm:$0xff]
    %v1972 = vld [vmem:[#allocation11 + $0x100] sm:$0xff]
    %v1973 = vld [vmem:[#allocation11 + $0x108] sm:$0xff]
    %v1974 = vld [vmem:[#allocation11 + $0x110] sm:$0xff]
    %v1975 = vld [vmem:[#allocation11 + $0x118] sm:$0xff]
    %v1976 = vld [vmem:[#allocation11 + $0x120] sm:$0xff]
    %v1977 = vld [vmem:[#allocation11 + $0x128] sm:$0xff]
    %v1978 = vld [vmem:[#allocation11 + $0x130] sm:$0xff]
    %v1979 = vld [vmem:[#allocation11 + $0x138] sm:$0xff]
    %v1980 = vld [vmem:[#allocation11 + $0x140] sm:$0xff]
    %v1981 = vld [vmem:[#allocation11 + $0x148] sm:$0xff]
    %v1982 = vld [vmem:[#allocation11 + $0x150] sm:$0xff]
    %v1983 = vld [vmem:[#allocation11 + $0x158] sm:$0xff]
    %v1984 = vld [vmem:[#allocation11 + $0x160] sm:$0xff]
    %v1985 = vld [vmem:[#allocation11 + $0x168] sm:$0xff]
    %v1986 = vld [vmem:[#allocation11 + $0x170] sm:$0xff]
    %v1987 = vld [vmem:[#allocation11 + $0x178] sm:$0xff]
    %v1988 = vld [vmem:[#allocation11 + $0x180] sm:$0xff]
    %v1989 = vld [vmem:[#allocation11 + $0x188] sm:$0xff]
    %v1990 = vld [vmem:[#allocation11 + $0x190] sm:$0xff]
    %v1991 = vld [vmem:[#allocation11 + $0x198] sm:$0xff]
    %v1992 = vld [vmem:[#allocation11 + $0x1a0] sm:$0xff]
    %v1993 = vld [vmem:[#allocation11 + $0x1a8] sm:$0xff]
    %v1994 = vld [vmem:[#allocation11 + $0x1b0] sm:$0xff]
    %v1995 = vld [vmem:[#allocation11 + $0x1b8] sm:$0xff]
    %v1996 = vld [vmem:[#allocation11 + $0x1c0] sm:$0xff]
    %v1997 = vld [vmem:[#allocation11 + $0x1c8] sm:$0xff]
    %v1998 = vld [vmem:[#allocation11 + $0x1d0] sm:$0xff]
    %v1999 = vld [vmem:[#allocation11 + $0x1d8] sm:$0xff]
    %v2000 = vld [vmem:[#allocation11 + $0x1e0] sm:$0xff]
    %v2001 = vld [vmem:[#allocation11 + $0x1e8] sm:$0xff]
    %v2002 = vld [vmem:[#allocation11 + $0x1f0] sm:$0xff]
    %v2003 = vld [vmem:[#allocation11 + $0x1f8] sm:$0xff]
    %v2004 = vld [vmem:[#allocation11 + $0x200] sm:$0xff]
    %v2005 = vld [vmem:[#allocation11 + $0x208] sm:$0xff]
    %v2006 = vld [vmem:[#allocation11 + $0x210] sm:$0xff]
    %v2007 = vld [vmem:[#allocation11 + $0x218] sm:$0xff]
    %v2008 = vld [vmem:[#allocation11 + $0x220] sm:$0xff]
    %v2009 = vld [vmem:[#allocation11 + $0x228] sm:$0xff]
    %v2010 = vld [vmem:[#allocation11 + $0x230] sm:$0xff]
    %v2011 = vld [vmem:[#allocation11 + $0x238] sm:$0xff]
    %v2012 = vld [vmem:[#allocation11 + $0x240] sm:$0xff]
    %v2013 = vld [vmem:[#allocation11 + $0x248] sm:$0xff]
    %v2014 = vld [vmem:[#allocation11 + $0x250] sm:$0xff]
    %v2015 = vld [vmem:[#allocation11 + $0x258] sm:$0xff]
    %v2016 = vld [vmem:[#allocation11 + $0x260] sm:$0xff]
    %v2017 = vld [vmem:[#allocation11 + $0x268] sm:$0xff]
    %v2018 = vld [vmem:[#allocation11 + $0x270] sm:$0xff]
    %v2019 = vld [vmem:[#allocation11 + $0x278] sm:$0xff]
    %v2020 = vld [vmem:[#allocation11 + $0x280] sm:$0xff]
    %v2021 = vld [vmem:[#allocation11 + $0x288] sm:$0xff]
    %v2022 = vld [vmem:[#allocation11 + $0x290] sm:$0xff]
    %v2023 = vld [vmem:[#allocation11 + $0x298] sm:$0xff]
    %v2024 = vld [vmem:[#allocation11 + $0x2a0] sm:$0xff]
    %v2025 = vld [vmem:[#allocation11 + $0x2a8] sm:$0xff]
    %v2026 = vld [vmem:[#allocation11 + $0x2b0] sm:$0xff]
    %v2027 = vld [vmem:[#allocation11 + $0x2b8] sm:$0xff]
    %v2028 = vld [vmem:[#allocation11 + $0x2c0] sm:$0xff]
    %v2029 = vld [vmem:[#allocation11 + $0x2c8] sm:$0xff]
    %v2030 = vld [vmem:[#allocation11 + $0x2d0] sm:$0xff]
    %v2031 = vld [vmem:[#allocation11 + $0x2d8] sm:$0xff]
    %v2032 = vld [vmem:[#allocation11 + $0x2e0] sm:$0xff]
    %v2033 = vld [vmem:[#allocation11 + $0x2e8] sm:$0xff]
    %v2034 = vld [vmem:[#allocation11 + $0x2f0] sm:$0xff]
    %v2035 = vld [vmem:[#allocation11 + $0x2f8] sm:$0xff]
    %v2036 = vld [vmem:[#allocation11 + $0x300] sm:$0xff]
    %v2037 = vld [vmem:[#allocation11 + $0x308] sm:$0xff]
    %v2038 = vld [vmem:[#allocation11 + $0x310] sm:$0xff]
    %v2039 = vld [vmem:[#allocation11 + $0x318] sm:$0xff]
    %v2040 = vld [vmem:[#allocation11 + $0x320] sm:$0xff]
    %v2041 = vld [vmem:[#allocation11 + $0x328] sm:$0xff]
    %v2042 = vld [vmem:[#allocation11 + $0x330] sm:$0xff]
    %v2043 = vld [vmem:[#allocation11 + $0x338] sm:$0xff]
    %v2044 = vld [vmem:[#allocation11 + $0x340] sm:$0xff]
    %v2045 = vld [vmem:[#allocation11 + $0x348] sm:$0xff]
    %v2046 = vld [vmem:[#allocation11 + $0x350] sm:$0xff]
    %v2047 = vld [vmem:[#allocation11 + $0x358] sm:$0xff]
    %v2048 = vld [vmem:[#allocation11 + $0x360] sm:$0xff]
    %v2049 = vld [vmem:[#allocation11 + $0x368] sm:$0xff]
    %v2050 = vld [vmem:[#allocation11 + $0x370] sm:$0xff]
    %v2051 = vld [vmem:[#allocation11 + $0x378] sm:$0xff]
    %v2052 = vld [vmem:[#allocation11 + $0x380] sm:$0xff]
    %v2053 = vld [vmem:[#allocation11 + $0x388] sm:$0xff]
    %v2054 = vld [vmem:[#allocation11 + $0x390] sm:$0xff]
    %v2055 = vld [vmem:[#allocation11 + $0x398] sm:$0xff]
    %v2056 = vld [vmem:[#allocation11 + $0x3a0] sm:$0xff]
    %v2057 = vld [vmem:[#allocation11 + $0x3a8] sm:$0xff]
    %v2058 = vld [vmem:[#allocation11 + $0x3b0] sm:$0xff]
    %v2059 = vld [vmem:[#allocation11 + $0x3b8] sm:$0xff]
    %v2060 = vld [vmem:[#allocation11 + $0x3c0] sm:$0xff]
    %v2061 = vld [vmem:[#allocation11 + $0x3c8] sm:$0xff]
    %v2062 = vld [vmem:[#allocation11 + $0x3d0] sm:$0xff]
    %v2063 = vld [vmem:[#allocation11 + $0x3d8] sm:$0xff]
    %v2064 = vld [vmem:[#allocation11 + $0x3e0] sm:$0xff]
    %v2065 = vld [vmem:[#allocation11 + $0x3e8] sm:$0xff]
    %v2066 = vld [vmem:[#allocation11 + $0x3f0] sm:$0xff]
    %v2067 = vld [vmem:[#allocation11 + $0x3f8] sm:$0xff]
    %v2068 = vlaneseq
    %v2069 = vshrl.u32 %v2068, 7
    %v2070 = vsub.s32 3, %v2069
    %v2071 = vrot.slane %v160, %v2070
    %v2072 = vlaneseq
    %v2073 = vshrl.u32 %v2072, 7
    %v2074 = vsub.s32 3, %v2073
    %v2075 = vrot.slane %v161, %v2074
    %2076 = vmatprep.subr.mxu0 %v1971
    %2077 = vmatpush1.msra.mxu0 %v1970
    %2078 = vmatprep.subr.mxu0 %v1969
    %2079 = vmatpush1.msra.mxu0 %v1968
    %2080 = vmatprep.subr.mxu0 %v1967
    %2081 = vmatpush1.msra.mxu0 %v1966
    %2082 = vmatprep.subr.mxu0 %v1965
    %2083 = vmatpush1.msra.mxu0 %v1964
    %2084 = vmatprep.subr.mxu0 %v1963
    %2085 = vmatpush1.msra.mxu0 %v1962
    %2086 = vmatprep.subr.mxu0 %v1961
    %2087 = vmatpush1.msra.mxu0 %v1960
    %2088 = vmatprep.subr.mxu0 %v1959
    %2089 = vmatpush1.msra.mxu0 %v1958
    %2090 = vmatprep.subr.mxu0 %v1957
    %2091 = vmatpush1.msra.mxu0 %v1956
    %2092 = vmatprep.subr.mxu0 %v1955
    %2093 = vmatpush1.msra.mxu0 %v1954
    %2094 = vmatprep.subr.mxu0 %v1953
    %2095 = vmatpush1.msra.mxu0 %v1952
    %2096 = vmatprep.subr.mxu0 %v1951
    %2097 = vmatpush1.msra.mxu0 %v1950
    %2098 = vmatprep.subr.mxu0 %v1949
    %2099 = vmatpush1.msra.mxu0 %v1948
    %2100 = vmatprep.subr.mxu0 %v1947
    %2101 = vmatpush1.msra.mxu0 %v1946
    %2102 = vmatprep.subr.mxu0 %v1945
    %2103 = vmatpush1.msra.mxu0 %v1944
    %2104 = vmatprep.subr.mxu0 %v1943
    %2105 = vmatpush1.msra.mxu0 %v1942
    %2106 = vmatprep.subr.mxu0 %v1941
    %2107 = vmatpush1.msra.mxu0 %v1940
    %2108 = vmatprep.subr.mxu0 %v2003
    %2109 = vmatpush2.msra.mxu0 %v2002
    %2110 = vmatprep.subr.mxu0 %v2001
    %2111 = vmatpush2.msra.mxu0 %v2000
    %2112 = vmatprep.subr.mxu0 %v1999
    %2113 = vmatpush2.msra.mxu0 %v1998
    %2114 = vmatprep.subr.mxu0 %v1997
    %2115 = vmatpush2.msra.mxu0 %v1996
    %2116 = vmatprep.subr.mxu0 %v1995
    %2117 = vmatpush2.msra.mxu0 %v1994
    %2118 = vmatprep.subr.mxu0 %v1993
    %2119 = vmatpush2.msra.mxu0 %v1992
    %2120 = vmatprep.subr.mxu0 %v1991
    %2121 = vmatpush2.msra.mxu0 %v1990
    %2122 = vmatprep.subr.mxu0 %v1989
    %2123 = vmatpush2.msra.mxu0 %v1988
    %2124 = vmatprep.subr.mxu0 %v1987
    %2125 = vmatpush2.msra.mxu0 %v1986
    %2126 = vmatprep.subr.mxu0 %v1985
    %2127 = vmatpush2.msra.mxu0 %v1984
    %2128 = vmatprep.subr.mxu0 %v1983
    %2129 = vmatpush2.msra.mxu0 %v1982
    %2130 = vmatprep.subr.mxu0 %v1981
    %2131 = vmatpush2.msra.mxu0 %v1980
    %2132 = vmatprep.subr.mxu0 %v1979
    %2133 = vmatpush2.msra.mxu0 %v1978
    %2134 = vmatprep.subr.mxu0 %v1977
    %2135 = vmatpush2.msra.mxu0 %v1976
    %2136 = vmatprep.subr.mxu0 %v1975
    %2137 = vmatpush2.msra.mxu0 %v1974
    %2138 = vmatprep.subr.mxu0 %v1973
    %2139 = vmatpush2.msra.mxu0 %v1972
    %2140 = vmatprep.mubr.f32.mxu0 %v1937
    %2141 = vmatmul.mubr.f32.gmra.mxu0 %v1936
    %v2142 = vpop.f32.mrf.mxu0
    %v2143 = vadd.f32 %v2071, %v2142
    %v2144 = vpop.f32.mrf.mxu0
    %v2145 = vadd.f32 %v2075, %v2144
    %2146 = vdwg.mxu0
    %2147 = vmatprep.subr.mxu0 %v2035
    %2148 = vmatpush1.msra.mxu0 %v2034
    %2149 = vmatprep.subr.mxu0 %v2033
    %2150 = vmatpush1.msra.mxu0 %v2032
    %2151 = vmatprep.subr.mxu0 %v2031
    %2152 = vmatpush1.msra.mxu0 %v2030
    %2153 = vmatprep.subr.mxu0 %v2029
    %2154 = vmatpush1.msra.mxu0 %v2028
    %2155 = vmatprep.subr.mxu0 %v2027
    %2156 = vmatpush1.msra.mxu0 %v2026
    %2157 = vmatprep.subr.mxu0 %v2025
    %2158 = vmatpush1.msra.mxu0 %v2024
    %2159 = vmatprep.subr.mxu0 %v2023
    %2160 = vmatpush1.msra.mxu0 %v2022
    %2161 = vmatprep.subr.mxu0 %v2021
    %2162 = vmatpush1.msra.mxu0 %v2020
    %2163 = vmatprep.subr.mxu0 %v2019
    %2164 = vmatpush1.msra.mxu0 %v2018
    %2165 = vmatprep.subr.mxu0 %v2017
    %2166 = vmatpush1.msra.mxu0 %v2016
    %2167 = vmatprep.subr.mxu0 %v2015
    %2168 = vmatpush1.msra.mxu0 %v2014
    %2169 = vmatprep.subr.mxu0 %v2013
    %2170 = vmatpush1.msra.mxu0 %v2012
    %2171 = vmatprep.subr.mxu0 %v2011
    %2172 = vmatpush1.msra.mxu0 %v2010
    %2173 = vmatprep.subr.mxu0 %v2009
    %2174 = vmatpush1.msra.mxu0 %v2008
    %2175 = vmatprep.subr.mxu0 %v2007
    %2176 = vmatpush1.msra.mxu0 %v2006
    %2177 = vmatprep.subr.mxu0 %v2005
    %2178 = vmatpush1.msra.mxu0 %v2004
    %2179 = vmatprep.subr.mxu0 %v2067
    %2180 = vmatpush2.msra.mxu0 %v2066
    %2181 = vmatprep.subr.mxu0 %v2065
    %2182 = vmatpush2.msra.mxu0 %v2064
    %2183 = vmatprep.subr.mxu0 %v2063
    %2184 = vmatpush2.msra.mxu0 %v2062
    %2185 = vmatprep.subr.mxu0 %v2061
    %2186 = vmatpush2.msra.mxu0 %v2060
    %2187 = vmatprep.subr.mxu0 %v2059
    %2188 = vmatpush2.msra.mxu0 %v2058
    %2189 = vmatprep.subr.mxu0 %v2057
    %2190 = vmatpush2.msra.mxu0 %v2056
    %2191 = vmatprep.subr.mxu0 %v2055
    %2192 = vmatpush2.msra.mxu0 %v2054
    %2193 = vmatprep.subr.mxu0 %v2053
    %2194 = vmatpush2.msra.mxu0 %v2052
    %2195 = vmatprep.subr.mxu0 %v2051
    %2196 = vmatpush2.msra.mxu0 %v2050
    %2197 = vmatprep.subr.mxu0 %v2049
    %2198 = vmatpush2.msra.mxu0 %v2048
    %2199 = vmatprep.subr.mxu0 %v2047
    %2200 = vmatpush2.msra.mxu0 %v2046
    %2201 = vmatprep.subr.mxu0 %v2045
    %2202 = vmatpush2.msra.mxu0 %v2044
    %2203 = vmatprep.subr.mxu0 %v2043
    %2204 = vmatpush2.msra.mxu0 %v2042
    %2205 = vmatprep.subr.mxu0 %v2041
    %2206 = vmatpush2.msra.mxu0 %v2040
    %2207 = vmatprep.subr.mxu0 %v2039
    %2208 = vmatpush2.msra.mxu0 %v2038
    %2209 = vmatprep.subr.mxu0 %v2037
    %2210 = vmatpush2.msra.mxu0 %v2036
    %2211 = vmatprep.mubr.f32.mxu0 %v1939
    %2212 = vmatmul.mubr.f32.gmra.mxu0 %v1938
    %v2213 = vpop.f32.mrf.mxu0
    %v2214 = vadd.f32 %v2143, %v2213
    %v2215 = vpop.f32.mrf.mxu0
    %v2216 = vadd.f32 %v2145, %v2215
    %2217 = vdwg.mxu0
    %vm2218 = vcmp.gt.f32.partialorder %v2214, 0.0
    %vm2219 = vcmp.gt.f32.partialorder %v2216, 0.0
    %v2220 = vmin.f32 %v2214, 0.0
    %v2221 = vmin.f32 %v2216, 0.0
    %v2222 = vmul.f32 %v2220, 1.442695
    %v2223 = vpow.pop %v2222
    %v2224 = vmul.f32 %v2221, 1.442695
    %v2225 = vpow.pop %v2224
    %v2226 = vsub.f32 %v2223, 1.0
    %v2227 = vsub.f32 %v2225, 1.0
    %v2228 = vsel %vm2218, %v2214, %v2226
    %v2229 = vsel %vm2219, %v2216, %v2227
    %v2230 = vld [vmem:[#allocation13] sm:$0xff]
    %v2231 = vld [vmem:[#allocation13 + $0x8] sm:$0xff]
    %v2232 = vld [vmem:[#allocation13 + $0x10] sm:$0xff]
    %v2233 = vld [vmem:[#allocation13 + $0x18] sm:$0xff]
    %v2234 = vld [vmem:[#allocation13 + $0x20] sm:$0xff]
    %v2235 = vld [vmem:[#allocation13 + $0x28] sm:$0xff]
    %v2236 = vld [vmem:[#allocation13 + $0x30] sm:$0xff]
    %v2237 = vld [vmem:[#allocation13 + $0x38] sm:$0xff]
    %v2238 = vld [vmem:[#allocation13 + $0x40] sm:$0xff]
    %v2239 = vld [vmem:[#allocation13 + $0x48] sm:$0xff]
    %v2240 = vld [vmem:[#allocation13 + $0x50] sm:$0xff]
    %v2241 = vld [vmem:[#allocation13 + $0x58] sm:$0xff]
    %v2242 = vld [vmem:[#allocation13 + $0x60] sm:$0xff]
    %v2243 = vld [vmem:[#allocation13 + $0x68] sm:$0xff]
    %v2244 = vld [vmem:[#allocation13 + $0x70] sm:$0xff]
    %v2245 = vld [vmem:[#allocation13 + $0x78] sm:$0xff]
    %v2246 = vld [vmem:[#allocation13 + $0x80] sm:$0xff]
    %v2247 = vld [vmem:[#allocation13 + $0x88] sm:$0xff]
    %v2248 = vld [vmem:[#allocation13 + $0x90] sm:$0xff]
    %v2249 = vld [vmem:[#allocation13 + $0x98] sm:$0xff]
    %v2250 = vld [vmem:[#allocation13 + $0xa0] sm:$0xff]
    %v2251 = vld [vmem:[#allocation13 + $0xa8] sm:$0xff]
    %v2252 = vld [vmem:[#allocation13 + $0xb0] sm:$0xff]
    %v2253 = vld [vmem:[#allocation13 + $0xb8] sm:$0xff]
    %v2254 = vld [vmem:[#allocation13 + $0xc0] sm:$0xff]
    %v2255 = vld [vmem:[#allocation13 + $0xc8] sm:$0xff]
    %v2256 = vld [vmem:[#allocation13 + $0xd0] sm:$0xff]
    %v2257 = vld [vmem:[#allocation13 + $0xd8] sm:$0xff]
    %v2258 = vld [vmem:[#allocation13 + $0xe0] sm:$0xff]
    %v2259 = vld [vmem:[#allocation13 + $0xe8] sm:$0xff]
    %v2260 = vld [vmem:[#allocation13 + $0xf0] sm:$0xff]
    %v2261 = vld [vmem:[#allocation13 + $0xf8] sm:$0xff]
    %v2262 = vlaneseq
    %v2263 = vshrl.u32 %v2262, 7
    %v2264 = vsub.s32 4, %v2263
    %v2265 = vrot.slane %v160, %v2264
    %2266 = vmatprep.subr.mxu0 0.0
    %2267 = vmatpush1.msra.mxu0 %v2245
    %2268 = vmatprep.subr.mxu0 0.0
    %2269 = vmatpush1.msra.mxu0 %v2244
    %2270 = vmatprep.subr.mxu0 0.0
    %2271 = vmatpush1.msra.mxu0 %v2243
    %2272 = vmatprep.subr.mxu0 0.0
    %2273 = vmatpush1.msra.mxu0 %v2242
    %2274 = vmatprep.subr.mxu0 0.0
    %2275 = vmatpush1.msra.mxu0 %v2241
    %2276 = vmatprep.subr.mxu0 0.0
    %2277 = vmatpush1.msra.mxu0 %v2240
    %2278 = vmatprep.subr.mxu0 0.0
    %2279 = vmatpush1.msra.mxu0 %v2239
    %2280 = vmatprep.subr.mxu0 0.0
    %2281 = vmatpush1.msra.mxu0 %v2238
    %2282 = vmatprep.subr.mxu0 0.0
    %2283 = vmatpush1.msra.mxu0 %v2237
    %2284 = vmatprep.subr.mxu0 0.0
    %2285 = vmatpush1.msra.mxu0 %v2236
    %2286 = vmatprep.subr.mxu0 0.0
    %2287 = vmatpush1.msra.mxu0 %v2235
    %2288 = vmatprep.subr.mxu0 0.0
    %2289 = vmatpush1.msra.mxu0 %v2234
    %2290 = vmatprep.subr.mxu0 0.0
    %2291 = vmatpush1.msra.mxu0 %v2233
    %2292 = vmatprep.subr.mxu0 0.0
    %2293 = vmatpush1.msra.mxu0 %v2232
    %2294 = vmatprep.subr.mxu0 0.0
    %2295 = vmatpush1.msra.mxu0 %v2231
    %2296 = vmatprep.subr.mxu0 0.0
    %2297 = vmatpush1.msra.mxu0 %v2230
    %2298 = vmatprep.subr.mxu0 0.0
    %2299 = vmatpush2.msra.mxu0 %v2261
    %2300 = vmatprep.subr.mxu0 0.0
    %2301 = vmatpush2.msra.mxu0 %v2260
    %2302 = vmatprep.subr.mxu0 0.0
    %2303 = vmatpush2.msra.mxu0 %v2259
    %2304 = vmatprep.subr.mxu0 0.0
    %2305 = vmatpush2.msra.mxu0 %v2258
    %2306 = vmatprep.subr.mxu0 0.0
    %2307 = vmatpush2.msra.mxu0 %v2257
    %2308 = vmatprep.subr.mxu0 0.0
    %2309 = vmatpush2.msra.mxu0 %v2256
    %2310 = vmatprep.subr.mxu0 0.0
    %2311 = vmatpush2.msra.mxu0 %v2255
    %2312 = vmatprep.subr.mxu0 0.0
    %2313 = vmatpush2.msra.mxu0 %v2254
    %2314 = vmatprep.subr.mxu0 0.0
    %2315 = vmatpush2.msra.mxu0 %v2253
    %2316 = vmatprep.subr.mxu0 0.0
    %2317 = vmatpush2.msra.mxu0 %v2252
    %2318 = vmatprep.subr.mxu0 0.0
    %2319 = vmatpush2.msra.mxu0 %v2251
    %2320 = vmatprep.subr.mxu0 0.0
    %2321 = vmatpush2.msra.mxu0 %v2250
    %2322 = vmatprep.subr.mxu0 0.0
    %2323 = vmatpush2.msra.mxu0 %v2249
    %2324 = vmatprep.subr.mxu0 0.0
    %2325 = vmatpush2.msra.mxu0 %v2248
    %2326 = vmatprep.subr.mxu0 0.0
    %2327 = vmatpush2.msra.mxu0 %v2247
    %2328 = vmatprep.subr.mxu0 0.0
    %2329 = vmatpush2.msra.mxu0 %v2246
    %2330 = vmatprep.mubr.f32.mxu0 %v2229
    %2331 = vmatmul.mubr.f32.gmra.mxu0 %v2228
    %v2332 = vpop.f32.mrf.mxu0
    %v2333 = vadd.f32 %v2265, %v2332
    %v2334 = vpop.f32.mrf.mxu0
    %2335 = vdwg.mxu0
    %vm2336 = vcmp.gt.f32.partialorder %v2333, 0.0
    %v2337 = vmin.f32 %v2333, 0.0
    %v2338 = vmul.f32 %v2337, 1.442695
    %v2339 = vpow.pop %v2338
    %v2340 = vsub.f32 %v2339, 1.0
    %v2341 = vsel %vm2336, %v2333, %v2340
    %v2342 = vld [vmem:[%s11] sm:$0xff]
    %v2343 = vld [vmem:[%s11 + $0x8] sm:$0xff]
    %v2344 = vld [vmem:[%s11 + $0x10] sm:$0xff]
    %v2345 = vld [vmem:[%s11 + $0x18] sm:$0xff]
    %v2346 = vld [vmem:[%s11 + $0x20] sm:$0xff]
    %v2347 = vld [vmem:[%s11 + $0x28] sm:$0xff]
    %v2348 = vld [vmem:[%s11 + $0x30] sm:$0xff]
    %v2349 = vld [vmem:[%s11 + $0x38] sm:$0xff]
    %v2350 = vld [vmem:[%s11 + $0x40] sm:$0xff]
    %v2351 = vld [vmem:[%s11 + $0x48] sm:$0xff]
    %v2352 = vld [vmem:[%s11 + $0x50] sm:$0xff]
    %v2353 = vld [vmem:[%s11 + $0x58] sm:$0xff]
    %v2354 = vld [vmem:[%s11 + $0x60] sm:$0xff]
    %v2355 = vld [vmem:[%s11 + $0x68] sm:$0xff]
    %v2356 = vld [vmem:[%s11 + $0x70] sm:$0xff]
    %v2357 = vld [vmem:[%s11 + $0x78] sm:$0xff]
    %v2358 = vlaneseq
    %v2359 = vshrl.u32 %v2358, 7
    %v2360 = vsub.s32 5, %v2359
    %v2361 = vrot.slane %v160, %v2360
    %2362 = vmatprep.subr.mxu0 0.0
    %2363 = vmatpush1.msra.mxu0 %v2357
    %2364 = vmatprep.subr.mxu0 0.0
    %2365 = vmatpush1.msra.mxu0 %v2356
    %2366 = vmatprep.subr.mxu0 0.0
    %2367 = vmatpush1.msra.mxu0 %v2355
    %2368 = vmatprep.subr.mxu0 0.0
    %2369 = vmatpush1.msra.mxu0 %v2354
    %2370 = vmatprep.subr.mxu0 0.0
    %2371 = vmatpush1.msra.mxu0 %v2353
    %2372 = vmatprep.subr.mxu0 0.0
    %2373 = vmatpush1.msra.mxu0 %v2352
    %2374 = vmatprep.subr.mxu0 0.0
    %2375 = vmatpush1.msra.mxu0 %v2351
    %2376 = vmatprep.subr.mxu0 0.0
    %2377 = vmatpush1.msra.mxu0 %v2350
    %2378 = vmatprep.subr.mxu0 0.0
    %2379 = vmatpush1.msra.mxu0 %v2349
    %2380 = vmatprep.subr.mxu0 0.0
    %2381 = vmatpush1.msra.mxu0 %v2348
    %2382 = vmatprep.subr.mxu0 0.0
    %2383 = vmatpush1.msra.mxu0 %v2347
    %2384 = vmatprep.subr.mxu0 0.0
    %2385 = vmatpush1.msra.mxu0 %v2346
    %2386 = vmatprep.subr.mxu0 0.0
    %2387 = vmatpush1.msra.mxu0 %v2345
    %2388 = vmatprep.subr.mxu0 0.0
    %2389 = vmatpush1.msra.mxu0 %v2344
    %2390 = vmatprep.subr.mxu0 0.0
    %2391 = vmatpush1.msra.mxu0 %v2343
    %2392 = vmatprep.subr.mxu0 0.0
    %2393 = vmatpush1.msra.mxu0 %v2342
    %2394 = vmatprep.subr.mxu0 0.0
    %2395 = vmatpush2.msra.mxu0 0.0
    %2396 = vmatprep.subr.mxu0 0.0
    %2397 = vmatpush2.msra.mxu0 0.0
    %2398 = vmatprep.subr.mxu0 0.0
    %2399 = vmatpush2.msra.mxu0 0.0
    %2400 = vmatprep.subr.mxu0 0.0
    %2401 = vmatpush2.msra.mxu0 0.0
    %2402 = vmatprep.subr.mxu0 0.0
    %2403 = vmatpush2.msra.mxu0 0.0
    %2404 = vmatprep.subr.mxu0 0.0
    %2405 = vmatpush2.msra.mxu0 0.0
    %2406 = vmatprep.subr.mxu0 0.0
    %2407 = vmatpush2.msra.mxu0 0.0
    %2408 = vmatprep.subr.mxu0 0.0
    %2409 = vmatpush2.msra.mxu0 0.0
    %2410 = vmatprep.subr.mxu0 0.0
    %2411 = vmatpush2.msra.mxu0 0.0
    %2412 = vmatprep.subr.mxu0 0.0
    %2413 = vmatpush2.msra.mxu0 0.0
    %2414 = vmatprep.subr.mxu0 0.0
    %2415 = vmatpush2.msra.mxu0 0.0
    %2416 = vmatprep.subr.mxu0 0.0
    %2417 = vmatpush2.msra.mxu0 0.0
    %2418 = vmatprep.subr.mxu0 0.0
    %2419 = vmatpush2.msra.mxu0 0.0
    %2420 = vmatprep.subr.mxu0 0.0
    %2421 = vmatpush2.msra.mxu0 0.0
    %2422 = vmatprep.subr.mxu0 0.0
    %2423 = vmatpush2.msra.mxu0 0.0
    %2424 = vmatprep.subr.mxu0 0.0
    %2425 = vmatpush2.msra.mxu0 0.0
    %2426 = vmatprep.mubr.f32.mxu0 0.0
    %2427 = vmatmul.mubr.f32.gmra.mxu0 %v2341
    %v2428 = vpop.f32.mrf.mxu0
    %v2429 = vadd.f32 %v2361, %v2428
    %v2430 = vpop.f32.mrf.mxu0
    %2431 = vdwg.mxu0
    %vm2432 = vcmask 91136
    %2433 = vst.msk [vmem:[#allocation16] sm:$0x3] %vm2432, %v2429
    // Predicated region
    $region86: #{tpu_custom_call.1} parent=1 // pred_check
      _
    $region87: #{tpu_custom_call.1} parent=1 // pred_check_branch
      %2435 = sbr.rel (0) target = $region89
    $region88: #{tpu_custom_call.1} parent=1 // pred_region
      %s2437 = ssub.s32 32, 32
      %2438 = vsyncadd [#allocation4], %s2437
      %s2440 = sshll.u32 [#allocation16], 4
      %s2441 = int_to_ptr.vmem [resolvable:$true] %s2440
      %2443 = dma.vmem_to_hbm [thread:$0]  %s2441, 32, %s13, [#allocation4]
    $region89: #{tpu_custom_call.1} parent=1 // pred_fallthru
      _
    // Predicated region
    $region90: #{tpu_custom_call.1} parent=1 // pred_check
      _
    $region91: #{tpu_custom_call.1} parent=1 // pred_check_branch
      %2445 = sbr.rel (0) target = $region93
    $region92: #{tpu_custom_call.1} parent=1 // pred_region
      %2446 = dma.done [#allocation4], 32
    $region93: #{tpu_custom_call.1} parent=1 // pred_fallthru
      _
    %2447 = vsyncpa [#allocation3], 1
    %2448 = vsyncpa [#allocation6], 1
    %2449 = vsyncpa [#allocation9], 1
    %2450 = vsyncpa [#allocation12], 1
    %2451 = vsyncpa [#allocation15], 1
    %2452 = vsyncpa [#allocation4], 1

</llo_original>
